<compile_context>
chip_gen: v6e
topology: v6e:2x2x1
jax: 0.10.0
libtpu: 0.0.40
codegen_flags: <defaults>
</compile_context>

<pallas_src>
import functools

import jax
import jax.numpy as jnp
from jax.experimental import pallas as pl
from jax.experimental.pallas import tpu as pltpu


CFG = dict(
    vocab_size=256,
    context_length=64,
    emb_dim=64,          # D
    n_heads=4,           # H   -> head_dim = 16
    n_kv_groups=2,       # KV heads
    hidden_dim=128,      # FFN hidden
    n_layers=2,
    rope_base=10000.0,
    rope_freq=None,
    dtype=jnp.bfloat16,
)

EPS = 1e-5


# ------------------------------ tiling helper -------------------------------

def _tile(dim, pref, align):
    """Largest multiple of `align` that divides `dim` and is <= pref, else full dim.

    Guarantees the (8, 128) block-shape rule: either a multiple of `align`
    (8 for sublane dims, 128 for lane dims) or the full array extent.
    """
    if dim <= pref:
        return dim
    t = (pref // align) * align
    while t >= align:
        if dim % t == 0:
            return t
        t -= align
    return dim


# ----------------------------- Pallas kernels ------------------------------

def _norm_matmul_kernel(x_ref, g_ref, w_ref, o_ref, *, eps):
    # RMSNorm (f32 reduction) fused as prologue of the matmul; bf16 into MXU.
    x = x_ref[...].astype(jnp.float32)              # (tm, D)
    g = g_ref[...].astype(jnp.float32)              # (1, D)
    ms = jnp.mean(x * x, axis=-1, keepdims=True)
    xn = (x * jax.lax.rsqrt(ms + eps) * g).astype(jnp.bfloat16)
    o_ref[...] = jnp.dot(
        xn, w_ref[...], preferred_element_type=jnp.float32
    ).astype(o_ref.dtype)


def norm_matmul(x2d, gamma, w):
    # x2d: (M, D) bf16, gamma: (D,) f32, w: (D, N) bf16 -> (M, N) bf16
    M, D = x2d.shape
    N = w.shape[1]
    tm = _tile(M, 256, 8)
    tn = _tile(N, 256, 128)
    kernel = functools.partial(_norm_matmul_kernel, eps=EPS)
    return pl.pallas_call(
        kernel,
        out_shape=jax.ShapeDtypeStruct((M, N), jnp.bfloat16),
        grid=(M // tm, N // tn),
        in_specs=[pl.BlockSpec((tm, D), lambda i, j: (i, 0)),
                  pl.BlockSpec((1, D), lambda i, j: (0, 0)),
                  pl.BlockSpec((D, tn), lambda i, j: (0, j))],
        out_specs=pl.BlockSpec((tm, tn), lambda i, j: (i, j)),
        compiler_params=pltpu.CompilerParams(
            dimension_semantics=("parallel", "parallel")),
    )(x2d, gamma.reshape(1, D), w)


def _matmul_add_kernel(a_ref, w_ref, r_ref, o_ref, acc_ref):
    # Tiled matmul with f32 accumulator over K; residual add in the epilogue.
    k = pl.program_id(2)

    @pl.when(k == 0)
    def _():
        acc_ref[...] = jnp.zeros_like(acc_ref)

    acc_ref[...] += jnp.dot(
        a_ref[...], w_ref[...], preferred_element_type=jnp.float32)

    @pl.when(k == pl.num_programs(2) - 1)
    def _():
        o_ref[...] = (acc_ref[...] + r_ref[...].astype(jnp.float32)
                      ).astype(o_ref.dtype)


def matmul_add(a, w, res):
    # a: (M, K) bf16, w: (K, N) bf16, res: (M, N) bf16 -> res + a @ w (bf16)
    M, K = a.shape
    N = w.shape[1]
    tm = _tile(M, 256, 8)
    tn = _tile(N, 256, 128)
    tk = _tile(K, 512, 128)
    return pl.pallas_call(
        _matmul_add_kernel,
        out_shape=jax.ShapeDtypeStruct((M, N), jnp.bfloat16),
        grid=(M // tm, N // tn, K // tk),
        in_specs=[pl.BlockSpec((tm, tk), lambda i, j, k: (i, k)),
                  pl.BlockSpec((tk, tn), lambda i, j, k: (k, j)),
                  pl.BlockSpec((tm, tn), lambda i, j, k: (i, j))],
        out_specs=pl.BlockSpec((tm, tn), lambda i, j, k: (i, j)),
        scratch_shapes=[pltpu.VMEM((tm, tn), jnp.float32)],
        compiler_params=pltpu.CompilerParams(
            dimension_semantics=("parallel", "parallel", "arbitrary")),
    )(a, w, res)


def _ffn_kernel(x_ref, g_ref, w1_ref, w2_ref, w3_ref, o_ref, acc_ref, *, eps):
    # RMSNorm + SwiGLU + residual, tiled over the FFN hidden dim (axis 1).
    j = pl.program_id(1)
    x = x_ref[...].astype(jnp.float32)              # (tm, D) -- also the shortcut
    g = g_ref[...].astype(jnp.float32)              # (1, D)
    ms = jnp.mean(x * x, axis=-1, keepdims=True)
    xn = (x * jax.lax.rsqrt(ms + eps) * g).astype(jnp.bfloat16)

    h1 = jnp.dot(xn, w1_ref[...], preferred_element_type=jnp.float32)
    h2 = jnp.dot(xn, w2_ref[...], preferred_element_type=jnp.float32)
    h = (jax.nn.silu(h1) * h2).astype(jnp.bfloat16)

    @pl.when(j == 0)
    def _():
        acc_ref[...] = jnp.zeros_like(acc_ref)

    acc_ref[...] += jnp.dot(h, w3_ref[...], preferred_element_type=jnp.float32)

    @pl.when(j == pl.num_programs(1) - 1)
    def _():
        o_ref[...] = (acc_ref[...] + x).astype(o_ref.dtype)


def ffn_block(x2d, gamma, w1, w2, w3):
    # x2d: (M, D); w1,w2: (D, Hd); w3: (Hd, D) -> x2d + fc3(silu(fc1)*fc2) (bf16)
    M, D = x2d.shape
    Hd = w1.shape[1]
    tm = _tile(M, 256, 8)
    th = _tile(Hd, 512, 128)
    kernel = functools.partial(_ffn_kernel, eps=EPS)
    return pl.pallas_call(
        kernel,
        out_shape=jax.ShapeDtypeStruct((M, D), jnp.bfloat16),
        grid=(M // tm, Hd // th),
        in_specs=[pl.BlockSpec((tm, D), lambda i, j: (i, 0)),
                  pl.BlockSpec((1, D), lambda i, j: (0, 0)),
                  pl.BlockSpec((D, th), lambda i, j: (0, j)),
                  pl.BlockSpec((D, th), lambda i, j: (0, j)),
                  pl.BlockSpec((th, D), lambda i, j: (j, 0))],
        out_specs=pl.BlockSpec((tm, D), lambda i, j: (i, 0)),
        scratch_shapes=[pltpu.VMEM((tm, D), jnp.float32)],
        compiler_params=pltpu.CompilerParams(
            dimension_semantics=("parallel", "arbitrary")),
    )(x2d, gamma.reshape(1, D), w1, w2, w3)


def _attn_kernel(q_ref, k_ref, v_ref, o_ref, *, n_heads, n_kv, head_dim):
    # Refs squeezed over batch: q (T, H*Dh), k/v (T, KV*Dh), out (T, H*Dh).
    # All heads processed per grid step; KV head picked in-kernel (GQA, no repeat).
    gs = n_heads // n_kv
    scale = 1.0 / (head_dim ** 0.5)
    T = q_ref.shape[0]

    q_full = q_ref[...]                               # bf16
    k_full = k_ref[...]
    v_full = v_ref[...]

    row = jax.lax.broadcasted_iota(jnp.int32, (T, T), 0)
    col = jax.lax.broadcasted_iota(jnp.int32, (T, T), 1)
    causal = col > row                                # triu, diagonal=1

    outs = []
    for h in range(n_heads):
        kv = h // gs
        q = q_full[:, h * head_dim:(h + 1) * head_dim] * scale     # bf16
        k = k_full[:, kv * head_dim:(kv + 1) * head_dim]
        v = v_full[:, kv * head_dim:(kv + 1) * head_dim]
        s = jnp.dot(q, k.T, preferred_element_type=jnp.float32)    # (T, T) f32
        s = jnp.where(causal, -jnp.inf, s)
        m = jnp.max(s, axis=-1, keepdims=True)
        p = jnp.exp(s - m)
        denom = jnp.sum(p, axis=-1, keepdims=True)
        w = p * pl.reciprocal(denom, approx=True)
        outs.append(jnp.dot(w.astype(v.dtype), v,
                            preferred_element_type=jnp.float32))   # (T, Dh) f32

    o_ref[...] = jnp.concatenate(outs, axis=-1).astype(o_ref.dtype)


def attention(q, k, v, *, n_heads, n_kv, head_dim):
    # q: (B, T, H*Dh), k/v: (B, T, KV*Dh) bf16 -> (B, T, H*Dh) bf16
    B, T, D = q.shape
    KD = k.shape[-1]
    kernel = functools.partial(_attn_kernel, n_heads=n_heads, n_kv=n_kv,
                               head_dim=head_dim)
    return pl.pallas_call(
        kernel,
        out_shape=jax.ShapeDtypeStruct((B, T, D), jnp.bfloat16),
        grid=(B,),
        in_specs=[pl.BlockSpec((None, T, D), lambda b: (b, 0, 0)),
                  pl.BlockSpec((None, T, KD), lambda b: (b, 0, 0)),
                  pl.BlockSpec((None, T, KD), lambda b: (b, 0, 0))],
        out_specs=pl.BlockSpec((None, T, D), lambda b: (b, 0, 0)),
        compiler_params=pltpu.CompilerParams(
            dimension_semantics=("parallel",)),
    )(q, k, v)


# ------------------------------- RoPE (glue) --------------------------------

def precompute_rope_params(head_dim, theta_base, context_length, freq_config, dtype):
    assert head_dim % 2 == 0
    inv_freq = 1.0 / theta_base ** (
        jnp.arange(0, head_dim, 2, dtype=jnp.float32)[: head_dim // 2] / head_dim)
    if freq_config is not None:
        low_freq_wavelen = freq_config['original_context_length'] / freq_config['low_freq_factor']
        high_freq_wavelen = freq_config['original_context_length'] / freq_config['high_freq_factor']
        wavelen = 2 * jnp.pi / inv_freq
        inv_freq_llama = jnp.where(wavelen > low_freq_wavelen,
                                   inv_freq / freq_config['factor'], inv_freq)
        smooth = ((freq_config['original_context_length'] / wavelen
                   - freq_config['low_freq_factor'])
                  / (freq_config['high_freq_factor'] - freq_config['low_freq_factor']))
        smoothed = (1 - smooth) * (inv_freq / freq_config['factor']) + smooth * inv_freq
        is_medium = (wavelen <= low_freq_wavelen) & (wavelen >= high_freq_wavelen)
        inv_freq = jnp.where(is_medium, smoothed, inv_freq_llama)
    positions = jnp.arange(context_length, dtype=jnp.float32)
    angles = positions[:, None] * inv_freq[None, :]
    angles = jnp.concatenate([angles, angles], axis=1)
    return jnp.cos(angles).astype(dtype), jnp.sin(angles).astype(dtype)


def apply_rope(x, cos, sin):
    # x: (B, T, H, Dh) -- head axis kept in place (no physical transpose needed).
    b, t, h, d = x.shape
    x1 = x[..., : d // 2]
    x2 = x[..., d // 2:]
    cos_ = cos[:t, :][None, :, None, :]
    sin_ = sin[:t, :][None, :, None, :]
    rotated = jnp.concatenate([-x2, x1], axis=-1)
    return (x * cos_ + rotated * sin_).astype(x.dtype)


# ------------------------------ parameters ----------------------------------

def init_params(cfg):
    D, Hd, V = cfg['emb_dim'], cfg['hidden_dim'], cfg['vocab_size']
    nh, nkv = cfg['n_heads'], cfg['n_kv_groups']
    hd = D // nh
    dt = cfg['dtype']
    key = jax.random.PRNGKey(0)

    def nxt():
        nonlocal key
        key, sub = jax.random.split(key)
        return sub

    def lin(din, dout):
        return (jax.random.normal(nxt(), (din, dout), jnp.float32) * 0.02).astype(dt)

    params = dict(
        tok_emb=(jax.random.normal(nxt(), (V, D), jnp.float32) * 0.02).astype(dt),
        layers=[],
        final_norm=jnp.ones((D,), jnp.float32),
        out_head=lin(D, V),
    )
    for _ in range(cfg['n_layers']):
        wq, wk, wv = lin(D, D), lin(D, nkv * hd), lin(D, nkv * hd)
        params['layers'].append(dict(
            wqkv=jnp.concatenate([wq, wk, wv], axis=1),   # fused, lane-dense QKV
            wo=lin(D, D),
            norm1=jnp.ones((D,), jnp.float32),
            norm2=jnp.ones((D,), jnp.float32),
            w1=lin(D, Hd), w2=lin(D, Hd), w3=lin(Hd, D),
        ))
    return params


# ------------------------------- forward ------------------------------------

def llama3_forward(params, in_idx, cfg, cos, sin):
    B, T = in_idx.shape
    D = cfg['emb_dim']
    nh, nkv = cfg['n_heads'], cfg['n_kv_groups']
    hd = D // nh
    KD = nkv * hd
    M = B * T

    # TODO(synk): embedding gather stays in plain JAX (no dense Pallas equivalent).
    x = params['tok_emb'][in_idx].reshape(M, D)                 # (M, D) bf16

    for layer in params['layers']:
        # --- attention sub-block: fused norm1 + QKV projection (one kernel) ---
        qkv = norm_matmul(x, layer['norm1'], layer['wqkv'])     # (M, D + 2*KD)
        q = qkv[:, :D].reshape(B, T, nh, hd)
        k = qkv[:, D:D + KD].reshape(B, T, nkv, hd)
        v = qkv[:, D + KD:].reshape(B, T, KD)
        q = apply_rope(q, cos, sin).reshape(B, T, D)            # head-packed layout
        k = apply_rope(k, cos, sin).reshape(B, T, KD)
        ctx = attention(q, k, v, n_heads=nh, n_kv=nkv, head_dim=hd)   # (B, T, D)
        # out projection with fused residual add
        x = matmul_add(ctx.reshape(M, D), layer['wo'], x)       # (M, D)

        # --- feed-forward sub-block: fused norm2 + SwiGLU + residual ---
        x = ffn_block(x, layer['norm2'], layer['w1'], layer['w2'], layer['w3'])

    # final norm fused into the LM head matmul
    logits = norm_matmul(x, params['final_norm'], params['out_head'])
    return logits.reshape(B, T, cfg['vocab_size'])              # (B, T, V) bf16


# --------------------------------- main --------------------------------------

if __name__ == "__main__":
    cfg = CFG
    params = init_params(cfg)
    cos, sin = precompute_rope_params(
        cfg['emb_dim'] // cfg['n_heads'], cfg['rope_base'],
        cfg['context_length'], cfg['rope_freq'], cfg['dtype'])

    B, T = 2, 8
    in_idx = jax.random.randint(jax.random.PRNGKey(0), (B, T), 0,
                                cfg['vocab_size'], dtype=jnp.int32)

    @jax.jit
    def fwd(p, idx):
        return llama3_forward(p, idx, cfg, cos, sin)

    logits = fwd(params, in_idx)
    logits = jax.block_until_ready(logits)
    assert logits.shape == (B, T, cfg['vocab_size'])
    assert logits.dtype == jnp.bfloat16
    print("KERNEL_OK")
</pallas_src>

<mosaic_0001>
module attributes {stable_mosaic.version = 11 : i64} {
  func.func @_norm_matmul_kernel(%arg0: i32, %arg1: i32, %arg2: memref<16x64xbf16, #tpu.memory_space<vmem>>, %arg3: memref<1x64xf32, #tpu.memory_space<vmem>>, %arg4: memref<64x128xbf16, #tpu.memory_space<vmem>>, %arg5: memref<16x128xbf16, #tpu.memory_space<vmem>>) attributes {dimension_semantics = [#tpu.dimension_semantics<parallel>, #tpu.dimension_semantics<parallel>], iteration_bounds = array<i64: 1, 1>, scalar_prefetch = 0 : i64, scratch_operands = 0 : i64, tpu.core_type = #tpu.core_type<tc>, window_params = [{transform_indices = @transform_0, window_bounds = array<i64: 16, 64>}, {pipeline_mode = #tpu.pipeline_mode<synchronous>, transform_indices = @transform_1, window_bounds = array<i64: 1, 64>}, {transform_indices = @transform_2, window_bounds = array<i64: 64, 128>}, {transform_indices = @transform_3, window_bounds = array<i64: 16, 128>}]} {
    %c0 = arith.constant 0 : index
    %c0_0 = arith.constant 0 : index
    %0 = vector.load %arg2[%c0, %c0_0] : memref<16x64xbf16, #tpu.memory_space<vmem>>, vector<16x64xbf16>
    %1 = arith.extf %0 : vector<16x64xbf16> to vector<16x64xf32>
    %c0_1 = arith.constant 0 : index
    %c0_2 = arith.constant 0 : index
    %2 = vector.load %arg3[%c0_1, %c0_2] : memref<1x64xf32, #tpu.memory_space<vmem>>, vector<1x64xf32>
    %3 = arith.mulf %1, %1 : vector<16x64xf32>
    %cst = arith.constant dense<0.000000e+00> : vector<16xf32>
    %4 = vector.multi_reduction <add>, %3, %cst [1] : vector<16x64xf32> to vector<16xf32>
    %5 = vector.shape_cast %4 : vector<16xf32> to vector<16x1xf32>
    %cst_3 = arith.constant 6.400000e+01 : f32
    %6 = vector.broadcast %cst_3 : f32 to vector<16x1xf32>
    %7 = arith.divf %5, %6 : vector<16x1xf32>
    %cst_4 = arith.constant 9.99999974E-6 : f32
    %8 = vector.broadcast %cst_4 : f32 to vector<16x1xf32>
    %9 = arith.addf %7, %8 : vector<16x1xf32>
    %10 = math.rsqrt %9 : vector<16x1xf32>
    %11 = vector.broadcast %10 : vector<16x1xf32> to vector<16x64xf32>
    %12 = arith.mulf %1, %11 : vector<16x64xf32>
    %13 = vector.broadcast %2 : vector<1x64xf32> to vector<16x64xf32>
    %14 = arith.mulf %12, %13 : vector<16x64xf32>
    %15 = arith.truncf %14 : vector<16x64xf32> to vector<16x64xbf16>
    %c0_5 = arith.constant 0 : index
    %c0_6 = arith.constant 0 : index
    %16 = vector.load %arg4[%c0_5, %c0_6] : memref<64x128xbf16, #tpu.memory_space<vmem>>, vector<64x128xbf16>
    %cst_7 = arith.constant dense<0.000000e+00> : vector<16x128xf32>
    %17 = tpu.matmul %15, %16, %cst_7 {dimension_numbers = #tpu.dot_dimension_numbers<[1], [0], [0], [1], [0, 0, 1, 1], [], []>} : vector<16x64xbf16>, vector<64x128xbf16>, vector<16x128xf32> -> vector<16x128xf32>
    %18 = arith.truncf %17 : vector<16x128xf32> to vector<16x128xbf16>
    %c0_8 = arith.constant 0 : index
    %c0_9 = arith.constant 0 : index
    %19 = vector.load %arg5[%c0_8, %c0_9] : memref<16x128xbf16, #tpu.memory_space<vmem>>, vector<16x128xbf16>
    tpu.vector_store %arg5[%c0_8, %c0_9], %18 {strides = array<i32>} : memref<16x128xbf16, #tpu.memory_space<vmem>>, vector<16x128xbf16>,
    return
  }
  func.func @transform_0(%arg0: i32, %arg1: i32) -> (i32, i32) {
    %c0_i32 = arith.constant 0 : i32
    %c0_i32_0 = arith.constant 0 : i32
    return %arg0, %c0_i32 : i32, i32
  }
  func.func @transform_1(%arg0: i32, %arg1: i32) -> (i32, i32) {
    %c0_i32 = arith.constant 0 : i32
    %c0_i32_0 = arith.constant 0 : i32
    %c0_i32_1 = arith.constant 0 : i32
    return %c0_i32, %c0_i32_0 : i32, i32
  }
  func.func @transform_2(%arg0: i32, %arg1: i32) -> (i32, i32) {
    %c0_i32 = arith.constant 0 : i32
    %c0_i32_0 = arith.constant 0 : i32
    return %c0_i32, %arg1 : i32, i32
  }
  func.func @transform_3(%arg0: i32, %arg1: i32) -> (i32, i32) {
    %c0_i32 = arith.constant 0 : i32
    return %arg0, %arg1 : i32, i32
  }
}

module attributes {stable_mosaic.version = 11 : i64} {
  func.func @_matmul_add_kernel(%arg0: i32, %arg1: i32, %arg2: i32, %arg3: memref<16x64xbf16, #tpu.memory_space<vmem>>, %arg4: memref<64x64xbf16, #tpu.memory_space<vmem>>, %arg5: memref<16x64xbf16, #tpu.memory_space<vmem>>, %arg6: memref<16x64xbf16, #tpu.memory_space<vmem>>, %arg7: memref<16x64xf32, #tpu.memory_space<vmem>>) attributes {dimension_semantics = [#tpu.dimension_semantics<parallel>, #tpu.dimension_semantics<parallel>, #tpu.dimension_semantics<arbitrary>], iteration_bounds = array<i64: 1, 1, 1>, scalar_prefetch = 0 : i64, scratch_operands = 1 : i64, tpu.core_type = #tpu.core_type<tc>, window_params = [{transform_indices = @transform_0, window_bounds = array<i64: 16, 64>}, {transform_indices = @transform_1, window_bounds = array<i64: 64, 64>}, {transform_indices = @transform_2, window_bounds = array<i64: 16, 64>}, {transform_indices = @transform_3, window_bounds = array<i64: 16, 64>}]} {
    %c0_i32 = arith.constant 0 : i32
    %0 = arith.cmpi eq, %arg2, %c0_i32 : i32
    %1 = arith.extui %0 : i1 to i32
    %c0_i32_0 = arith.constant 0 : i32
    %2 = arith.cmpi ne, %1, %c0_i32_0 : i32
    scf.if %2 {
      %cst_10 = arith.constant 0.000000e+00 : f32
      %12 = vector.broadcast %cst_10 : f32 to vector<16x64xf32>
      %c0_11 = arith.constant 0 : index
      %c0_12 = arith.constant 0 : index
      %13 = vector.load %arg7[%c0_11, %c0_12] : memref<16x64xf32, #tpu.memory_space<vmem>>, vector<16x64xf32>
      tpu.vector_store %arg7[%c0_11, %c0_12], %12 {strides = array<i32>} : memref<16x64xf32, #tpu.memory_space<vmem>>, vector<16x64xf32>,
    } else {
    }
    %c0 = arith.constant 0 : index
    %c0_1 = arith.constant 0 : index
    %3 = vector.load %arg7[%c0, %c0_1] : memref<16x64xf32, #tpu.memory_space<vmem>>, vector<16x64xf32>
    %c0_2 = arith.constant 0 : index
    %c0_3 = arith.constant 0 : index
    %4 = vector.load %arg3[%c0_2, %c0_3] : memref<16x64xbf16, #tpu.memory_space<vmem>>, vector<16x64xbf16>
    %c0_4 = arith.constant 0 : index
    %c0_5 = arith.constant 0 : index
    %5 = vector.load %arg4[%c0_4, %c0_5] : memref<64x64xbf16, #tpu.memory_space<vmem>>, vector<64x64xbf16>
    %cst = arith.constant dense<0.000000e+00> : vector<16x64xf32>
    %6 = tpu.matmul %4, %5, %cst {dimension_numbers = #tpu.dot_dimension_numbers<[1], [0], [0], [1], [0, 0, 1, 1], [], []>} : vector<16x64xbf16>, vector<64x64xbf16>, vector<16x64xf32> -> vector<16x64xf32>
    %7 = arith.addf %3, %6 : vector<16x64xf32>
    %c0_6 = arith.constant 0 : index
    %c0_7 = arith.constant 0 : index
    %8 = vector.load %arg7[%c0_6, %c0_7] : memref<16x64xf32, #tpu.memory_space<vmem>>, vector<16x64xf32>
    tpu.vector_store %arg7[%c0_6, %c0_7], %7 {strides = array<i32>} : memref<16x64xf32, #tpu.memory_space<vmem>>, vector<16x64xf32>,
    %c0_i32_8 = arith.constant 0 : i32
    %9 = arith.cmpi eq, %arg2, %c0_i32_8 : i32
    %10 = arith.extui %9 : i1 to i32
    %c0_i32_9 = arith.constant 0 : i32
    %11 = arith.cmpi ne, %10, %c0_i32_9 : i32
    scf.if %11 {
      %c0_10 = arith.constant 0 : index
      %c0_11 = arith.constant 0 : index
      %12 = vector.load %arg7[%c0_10, %c0_11] : memref<16x64xf32, #tpu.memory_space<vmem>>, vector<16x64xf32>
      %c0_12 = arith.constant 0 : index
      %c0_13 = arith.constant 0 : index
      %13 = vector.load %arg5[%c0_12, %c0_13] : memref<16x64xbf16, #tpu.memory_space<vmem>>, vector<16x64xbf16>
      %14 = arith.extf %13 : vector<16x64xbf16> to vector<16x64xf32>
      %15 = arith.addf %12, %14 : vector<16x64xf32>
      %16 = arith.truncf %15 : vector<16x64xf32> to vector<16x64xbf16>
      %c0_14 = arith.constant 0 : index
      %c0_15 = arith.constant 0 : index
      %17 = vector.load %arg6[%c0_14, %c0_15] : memref<16x64xbf16, #tpu.memory_space<vmem>>, vector<16x64xbf16>
      tpu.vector_store %arg6[%c0_14, %c0_15], %16 {strides = array<i32>} : memref<16x64xbf16, #tpu.memory_space<vmem>>, vector<16x64xbf16>,
    } else {
    }
    return
  }
  func.func @transform_0(%arg0: i32, %arg1: i32, %arg2: i32) -> (i32, i32) {
    %c0_i32 = arith.constant 0 : i32
    return %arg0, %arg2 : i32, i32
  }
  func.func @transform_1(%arg0: i32, %arg1: i32, %arg2: i32) -> (i32, i32) {
    %c0_i32 = arith.constant 0 : i32
    return %arg2, %arg1 : i32, i32
  }
  func.func @transform_2(%arg0: i32, %arg1: i32, %arg2: i32) -> (i32, i32) {
    %c0_i32 = arith.constant 0 : i32
    return %arg0, %arg1 : i32, i32
  }
  func.func @transform_3(%arg0: i32, %arg1: i32, %arg2: i32) -> (i32, i32) {
    %c0_i32 = arith.constant 0 : i32
    return %arg0, %arg1 : i32, i32
  }
}

module attributes {stable_mosaic.version = 11 : i64} {
  func.func @_attn_kernel(%arg0: i32, %arg1: memref<1x8x64xbf16, #tpu.memory_space<vmem>>, %arg2: memref<1x8x32xbf16, #tpu.memory_space<vmem>>, %arg3: memref<1x8x32xbf16, #tpu.memory_space<vmem>>, %arg4: memref<1x8x64xbf16, #tpu.memory_space<vmem>>) attributes {dimension_semantics = [#tpu.dimension_semantics<parallel>], iteration_bounds = array<i64: 2>, scalar_prefetch = 0 : i64, scratch_operands = 0 : i64, tpu.core_type = #tpu.core_type<tc>, window_params = [{transform_indices = @transform_0, window_bounds = array<i64: 1, 8, 64>}, {transform_indices = @transform_1, window_bounds = array<i64: 1, 8, 32>}, {transform_indices = @transform_2, window_bounds = array<i64: 1, 8, 32>}, {transform_indices = @transform_3, window_bounds = array<i64: 1, 8, 64>}]} {
    %c0 = arith.constant 0 : index
    %c0_0 = arith.constant 0 : index
    %c0_1 = arith.constant 0 : index
    %0 = vector.load %arg1[%c0, %c0_0, %c0_1] : memref<1x8x64xbf16, #tpu.memory_space<vmem>>, vector<1x8x64xbf16>
    %1 = vector.shape_cast %0 : vector<1x8x64xbf16> to vector<8x64xbf16>
    %c0_2 = arith.constant 0 : index
    %c0_3 = arith.constant 0 : index
    %c0_4 = arith.constant 0 : index
    %2 = vector.load %arg2[%c0_2, %c0_3, %c0_4] : memref<1x8x32xbf16, #tpu.memory_space<vmem>>, vector<1x8x32xbf16>
    %3 = vector.shape_cast %2 : vector<1x8x32xbf16> to vector<8x32xbf16>
    %c0_5 = arith.constant 0 : index
    %c0_6 = arith.constant 0 : index
    %c0_7 = arith.constant 0 : index
    %4 = vector.load %arg3[%c0_5, %c0_6, %c0_7] : memref<1x8x32xbf16, #tpu.memory_space<vmem>>, vector<1x8x32xbf16>
    %5 = vector.shape_cast %4 : vector<1x8x32xbf16> to vector<8x32xbf16>
    %6 = tpu.iota {dimensions = array<i32: 0>} : vector<8x8xi32>
    %7 = tpu.iota {dimensions = array<i32: 1>} : vector<8x8xi32>
    %8 = arith.cmpi sgt, %7, %6 : vector<8x8xi32>
    %9 = vector.extract_strided_slice %1 {offsets = [0, 0], sizes = [8, 16], strides = [1, 1]} : vector<8x64xbf16> to vector<8x16xbf16>
    %cst = arith.constant 2.500000e-01 : bf16
    %10 = vector.broadcast %cst : bf16 to vector<8x16xbf16>
    %11 = arith.mulf %9, %10 : vector<8x16xbf16>
    %12 = vector.extract_strided_slice %3 {offsets = [0, 0], sizes = [8, 16], strides = [1, 1]} : vector<8x32xbf16> to vector<8x16xbf16>
    %13 = vector.extract_strided_slice %5 {offsets = [0, 0], sizes = [8, 16], strides = [1, 1]} : vector<8x32xbf16> to vector<8x16xbf16>
    %14 = tpu.transpose %12, [1, 0] : vector<8x16xbf16> -> vector<16x8xbf16>
    %cst_8 = arith.constant dense<0.000000e+00> : vector<8x8xf32>
    %15 = tpu.matmul %11, %14, %cst_8 {dimension_numbers = #tpu.dot_dimension_numbers<[1], [0], [0], [1], [0, 0, 1, 1], [], []>} : vector<8x16xbf16>, vector<16x8xbf16>, vector<8x8xf32> -> vector<8x8xf32>
    %cst_9 = arith.constant 0xFF800000 : f32
    %16 = vector.broadcast %cst_9 : f32 to vector<8x8xf32>
    %17 = arith.select %8, %16, %15 : vector<8x8xi1>, vector<8x8xf32>
    %cst_10 = arith.constant dense<0xFF800000> : vector<8xf32>
    %18 = vector.multi_reduction <maximumf>, %17, %cst_10 [1] : vector<8x8xf32> to vector<8xf32>
    %19 = vector.shape_cast %18 : vector<8xf32> to vector<8x1xf32>
    %20 = vector.broadcast %19 : vector<8x1xf32> to vector<8x8xf32>
    %21 = arith.subf %17, %20 : vector<8x8xf32>
    %22 = math.exp %21 : vector<8x8xf32>
    %cst_11 = arith.constant dense<0.000000e+00> : vector<8xf32>
    %23 = vector.multi_reduction <add>, %22, %cst_11 [1] : vector<8x8xf32> to vector<8xf32>
    %24 = vector.shape_cast %23 : vector<8xf32> to vector<8x1xf32>
    %25 = tpu.reciprocal %24 {approx = true} : vector<8x1xf32> -> vector<8x1xf32>
    %26 = vector.broadcast %25 : vector<8x1xf32> to vector<8x8xf32>
    %27 = arith.mulf %22, %26 : vector<8x8xf32>
    %28 = arith.truncf %27 : vector<8x8xf32> to vector<8x8xbf16>
    %cst_12 = arith.constant dense<0.000000e+00> : vector<8x16xf32>
    %29 = tpu.matmul %28, %13, %cst_12 {dimension_numbers = #tpu.dot_dimension_numbers<[1], [0], [0], [1], [0, 0, 1, 1], [], []>} : vector<8x8xbf16>, vector<8x16xbf16>, vector<8x16xf32> -> vector<8x16xf32>
    %30 = vector.extract_strided_slice %1 {offsets = [0, 16], sizes = [8, 16], strides = [1, 1]} : vector<8x64xbf16> to vector<8x16xbf16>
    %cst_13 = arith.constant 2.500000e-01 : bf16
    %31 = vector.broadcast %cst_13 : bf16 to vector<8x16xbf16>
    %32 = arith.mulf %30, %31 : vector<8x16xbf16>
    %33 = vector.extract_strided_slice %3 {offsets = [0, 0], sizes = [8, 16], strides = [1, 1]} : vector<8x32xbf16> to vector<8x16xbf16>
    %34 = vector.extract_strided_slice %5 {offsets = [0, 0], sizes = [8, 16], strides = [1, 1]} : vector<8x32xbf16> to vector<8x16xbf16>
    %35 = tpu.transpose %33, [1, 0] : vector<8x16xbf16> -> vector<16x8xbf16>
    %cst_14 = arith.constant dense<0.000000e+00> : vector<8x8xf32>
    %36 = tpu.matmul %32, %35, %cst_14 {dimension_numbers = #tpu.dot_dimension_numbers<[1], [0], [0], [1], [0, 0, 1, 1], [], []>} : vector<8x16xbf16>, vector<16x8xbf16>, vector<8x8xf32> -> vector<8x8xf32>
    %cst_15 = arith.constant 0xFF800000 : f32
    %37 = vector.broadcast %cst_15 : f32 to vector<8x8xf32>
    %38 = arith.select %8, %37, %36 : vector<8x8xi1>, vector<8x8xf32>
    %cst_16 = arith.constant dense<0xFF800000> : vector<8xf32>
    %39 = vector.multi_reduction <maximumf>, %38, %cst_16 [1] : vector<8x8xf32> to vector<8xf32>
    %40 = vector.shape_cast %39 : vector<8xf32> to vector<8x1xf32>
    %41 = vector.broadcast %40 : vector<8x1xf32> to vector<8x8xf32>
    %42 = arith.subf %38, %41 : vector<8x8xf32>
    %43 = math.exp %42 : vector<8x8xf32>
    %cst_17 = arith.constant dense<0.000000e+00> : vector<8xf32>
    %44 = vector.multi_reduction <add>, %43, %cst_17 [1] : vector<8x8xf32> to vector<8xf32>
    %45 = vector.shape_cast %44 : vector<8xf32> to vector<8x1xf32>
    %46 = tpu.reciprocal %45 {approx = true} : vector<8x1xf32> -> vector<8x1xf32>
    %47 = vector.broadcast %46 : vector<8x1xf32> to vector<8x8xf32>
    %48 = arith.mulf %43, %47 : vector<8x8xf32>
    %49 = arith.truncf %48 : vector<8x8xf32> to vector<8x8xbf16>
    %cst_18 = arith.constant dense<0.000000e+00> : vector<8x16xf32>
    %50 = tpu.matmul %49, %34, %cst_18 {dimension_numbers = #tpu.dot_dimension_numbers<[1], [0], [0], [1], [0, 0, 1, 1], [], []>} : vector<8x8xbf16>, vector<8x16xbf16>, vector<8x16xf32> -> vector<8x16xf32>
    %51 = vector.extract_strided_slice %1 {offsets = [0, 32], sizes = [8, 16], strides = [1, 1]} : vector<8x64xbf16> to vector<8x16xbf16>
    %cst_19 = arith.constant 2.500000e-01 : bf16
    %52 = vector.broadcast %cst_19 : bf16 to vector<8x16xbf16>
    %53 = arith.mulf %51, %52 : vector<8x16xbf16>
    %54 = vector.extract_strided_slice %3 {offsets = [0, 16], sizes = [8, 16], strides = [1, 1]} : vector<8x32xbf16> to vector<8x16xbf16>
    %55 = vector.extract_strided_slice %5 {offsets = [0, 16], sizes = [8, 16], strides = [1, 1]} : vector<8x32xbf16> to vector<8x16xbf16>
    %56 = tpu.transpose %54, [1, 0] : vector<8x16xbf16> -> vector<16x8xbf16>
    %cst_20 = arith.constant dense<0.000000e+00> : vector<8x8xf32>
    %57 = tpu.matmul %53, %56, %cst_20 {dimension_numbers = #tpu.dot_dimension_numbers<[1], [0], [0], [1], [0, 0, 1, 1], [], []>} : vector<8x16xbf16>, vector<16x8xbf16>, vector<8x8xf32> -> vector<8x8xf32>
    %cst_21 = arith.constant 0xFF800000 : f32
    %58 = vector.broadcast %cst_21 : f32 to vector<8x8xf32>
    %59 = arith.select %8, %58, %57 : vector<8x8xi1>, vector<8x8xf32>
    %cst_22 = arith.constant dense<0xFF800000> : vector<8xf32>
    %60 = vector.multi_reduction <maximumf>, %59, %cst_22 [1] : vector<8x8xf32> to vector<8xf32>
    %61 = vector.shape_cast %60 : vector<8xf32> to vector<8x1xf32>
    %62 = vector.broadcast %61 : vector<8x1xf32> to vector<8x8xf32>
    %63 = arith.subf %59, %62 : vector<8x8xf32>
    %64 = math.exp %63 : vector<8x8xf32>
    %cst_23 = arith.constant dense<0.000000e+00> : vector<8xf32>
    %65 = vector.multi_reduction <add>, %64, %cst_23 [1] : vector<8x8xf32> to vector<8xf32>
    %66 = vector.shape_cast %65 : vector<8xf32> to vector<8x1xf32>
    %67 = tpu.reciprocal %66 {approx = true} : vector<8x1xf32> -> vector<8x1xf32>
    %68 = vector.broadcast %67 : vector<8x1xf32> to vector<8x8xf32>
    %69 = arith.mulf %64, %68 : vector<8x8xf32>
    %70 = arith.truncf %69 : vector<8x8xf32> to vector<8x8xbf16>
    %cst_24 = arith.constant dense<0.000000e+00> : vector<8x16xf32>
    %71 = tpu.matmul %70, %55, %cst_24 {dimension_numbers = #tpu.dot_dimension_numbers<[1], [0], [0], [1], [0, 0, 1, 1], [], []>} : vector<8x8xbf16>, vector<8x16xbf16>, vector<8x16xf32> -> vector<8x16xf32>
    %72 = vector.extract_strided_slice %1 {offsets = [0, 48], sizes = [8, 16], strides = [1, 1]} : vector<8x64xbf16> to vector<8x16xbf16>
    %cst_25 = arith.constant 2.500000e-01 : bf16
    %73 = vector.broadcast %cst_25 : bf16 to vector<8x16xbf16>
    %74 = arith.mulf %72, %73 : vector<8x16xbf16>
    %75 = vector.extract_strided_slice %3 {offsets = [0, 16], sizes = [8, 16], strides = [1, 1]} : vector<8x32xbf16> to vector<8x16xbf16>
    %76 = vector.extract_strided_slice %5 {offsets = [0, 16], sizes = [8, 16], strides = [1, 1]} : vector<8x32xbf16> to vector<8x16xbf16>
    %77 = tpu.transpose %75, [1, 0] : vector<8x16xbf16> -> vector<16x8xbf16>
    %cst_26 = arith.constant dense<0.000000e+00> : vector<8x8xf32>
    %78 = tpu.matmul %74, %77, %cst_26 {dimension_numbers = #tpu.dot_dimension_numbers<[1], [0], [0], [1], [0, 0, 1, 1], [], []>} : vector<8x16xbf16>, vector<16x8xbf16>, vector<8x8xf32> -> vector<8x8xf32>
    %cst_27 = arith.constant 0xFF800000 : f32
    %79 = vector.broadcast %cst_27 : f32 to vector<8x8xf32>
    %80 = arith.select %8, %79, %78 : vector<8x8xi1>, vector<8x8xf32>
    %cst_28 = arith.constant dense<0xFF800000> : vector<8xf32>
    %81 = vector.multi_reduction <maximumf>, %80, %cst_28 [1] : vector<8x8xf32> to vector<8xf32>
    %82 = vector.shape_cast %81 : vector<8xf32> to vector<8x1xf32>
    %83 = vector.broadcast %82 : vector<8x1xf32> to vector<8x8xf32>
    %84 = arith.subf %80, %83 : vector<8x8xf32>
    %85 = math.exp %84 : vector<8x8xf32>
    %cst_29 = arith.constant dense<0.000000e+00> : vector<8xf32>
    %86 = vector.multi_reduction <add>, %85, %cst_29 [1] : vector<8x8xf32> to vector<8xf32>
    %87 = vector.shape_cast %86 : vector<8xf32> to vector<8x1xf32>
    %88 = tpu.reciprocal %87 {approx = true} : vector<8x1xf32> -> vector<8x1xf32>
    %89 = vector.broadcast %88 : vector<8x1xf32> to vector<8x8xf32>
    %90 = arith.mulf %85, %89 : vector<8x8xf32>
    %91 = arith.truncf %90 : vector<8x8xf32> to vector<8x8xbf16>
    %cst_30 = arith.constant dense<0.000000e+00> : vector<8x16xf32>
    %92 = tpu.matmul %91, %76, %cst_30 {dimension_numbers = #tpu.dot_dimension_numbers<[1], [0], [0], [1], [0, 0, 1, 1], [], []>} : vector<8x8xbf16>, vector<8x16xbf16>, vector<8x16xf32> -> vector<8x16xf32>
    %93 = tpu.concatenate %29, %50, %71, %92 in 1 : vector<8x16xf32>, vector<8x16xf32>, vector<8x16xf32>, vector<8x16xf32> -> vector<8x64xf32>
    %94 = arith.truncf %93 : vector<8x64xf32> to vector<8x64xbf16>
    %c0_31 = arith.constant 0 : index
    %c0_32 = arith.constant 0 : index
    %c0_33 = arith.constant 0 : index
    %95 = vector.load %arg4[%c0_31, %c0_32, %c0_33] : memref<1x8x64xbf16, #tpu.memory_space<vmem>>, vector<1x8x64xbf16>
    %96 = vector.shape_cast %95 : vector<1x8x64xbf16> to vector<8x64xbf16>
    %97 = vector.shape_cast %94 : vector<8x64xbf16> to vector<1x8x64xbf16>
    tpu.vector_store %arg4[%c0_31, %c0_32, %c0_33], %97 {strides = array<i32>} : memref<1x8x64xbf16, #tpu.memory_space<vmem>>, vector<1x8x64xbf16>,
    return
  }
  func.func @transform_0(%arg0: i32) -> (i32, i32, i32) {
    %c0_i32 = arith.constant 0 : i32
    %c0_i32_0 = arith.constant 0 : i32
    %c0_i32_1 = arith.constant 0 : i32
    return %arg0, %c0_i32, %c0_i32_0 : i32, i32, i32
  }
  func.func @transform_1(%arg0: i32) -> (i32, i32, i32) {
    %c0_i32 = arith.constant 0 : i32
    %c0_i32_0 = arith.constant 0 : i32
    %c0_i32_1 = arith.constant 0 : i32
    return %arg0, %c0_i32, %c0_i32_0 : i32, i32, i32
  }
  func.func @transform_2(%arg0: i32) -> (i32, i32, i32) {
    %c0_i32 = arith.constant 0 : i32
    %c0_i32_0 = arith.constant 0 : i32
    %c0_i32_1 = arith.constant 0 : i32
    return %arg0, %c0_i32, %c0_i32_0 : i32, i32, i32
  }
  func.func @transform_3(%arg0: i32) -> (i32, i32, i32) {
    %c0_i32 = arith.constant 0 : i32
    %c0_i32_0 = arith.constant 0 : i32
    %c0_i32_1 = arith.constant 0 : i32
    return %arg0, %c0_i32, %c0_i32_0 : i32, i32, i32
  }
}

module attributes {stable_mosaic.version = 11 : i64} {
  func.func @_ffn_kernel(%arg0: i32, %arg1: i32, %arg2: memref<16x64xbf16, #tpu.memory_space<vmem>>, %arg3: memref<1x64xf32, #tpu.memory_space<vmem>>, %arg4: memref<64x128xbf16, #tpu.memory_space<vmem>>, %arg5: memref<64x128xbf16, #tpu.memory_space<vmem>>, %arg6: memref<128x64xbf16, #tpu.memory_space<vmem>>, %arg7: memref<16x64xbf16, #tpu.memory_space<vmem>>, %arg8: memref<16x64xf32, #tpu.memory_space<vmem>>) attributes {dimension_semantics = [#tpu.dimension_semantics<parallel>, #tpu.dimension_semantics<arbitrary>], iteration_bounds = array<i64: 1, 1>, scalar_prefetch = 0 : i64, scratch_operands = 1 : i64, tpu.core_type = #tpu.core_type<tc>, window_params = [{transform_indices = @transform_0, window_bounds = array<i64: 16, 64>}, {pipeline_mode = #tpu.pipeline_mode<synchronous>, transform_indices = @transform_1, window_bounds = array<i64: 1, 64>}, {transform_indices = @transform_2, window_bounds = array<i64: 64, 128>}, {transform_indices = @transform_3, window_bounds = array<i64: 64, 128>}, {transform_indices = @transform_4, window_bounds = array<i64: 128, 64>}, {transform_indices = @transform_5, window_bounds = array<i64: 16, 64>}]} {
    %c0 = arith.constant 0 : index
    %c0_0 = arith.constant 0 : index
    %0 = vector.load %arg2[%c0, %c0_0] : memref<16x64xbf16, #tpu.memory_space<vmem>>, vector<16x64xbf16>
    %1 = arith.extf %0 : vector<16x64xbf16> to vector<16x64xf32>
    %c0_1 = arith.constant 0 : index
    %c0_2 = arith.constant 0 : index
    %2 = vector.load %arg3[%c0_1, %c0_2] : memref<1x64xf32, #tpu.memory_space<vmem>>, vector<1x64xf32>
    %3 = arith.mulf %1, %1 : vector<16x64xf32>
    %cst = arith.constant dense<0.000000e+00> : vector<16xf32>
    %4 = vector.multi_reduction <add>, %3, %cst [1] : vector<16x64xf32> to vector<16xf32>
    %5 = vector.shape_cast %4 : vector<16xf32> to vector<16x1xf32>
    %cst_3 = arith.constant 6.400000e+01 : f32
    %6 = vector.broadcast %cst_3 : f32 to vector<16x1xf32>
    %7 = arith.divf %5, %6 : vector<16x1xf32>
    %cst_4 = arith.constant 9.99999974E-6 : f32
    %8 = vector.broadcast %cst_4 : f32 to vector<16x1xf32>
    %9 = arith.addf %7, %8 : vector<16x1xf32>
    %10 = math.rsqrt %9 : vector<16x1xf32>
    %11 = vector.broadcast %10 : vector<16x1xf32> to vector<16x64xf32>
    %12 = arith.mulf %1, %11 : vector<16x64xf32>
    %13 = vector.broadcast %2 : vector<1x64xf32> to vector<16x64xf32>
    %14 = arith.mulf %12, %13 : vector<16x64xf32>
    %15 = arith.truncf %14 : vector<16x64xf32> to vector<16x64xbf16>
    %c0_5 = arith.constant 0 : index
    %c0_6 = arith.constant 0 : index
    %16 = vector.load %arg4[%c0_5, %c0_6] : memref<64x128xbf16, #tpu.memory_space<vmem>>, vector<64x128xbf16>
    %cst_7 = arith.constant dense<0.000000e+00> : vector<16x128xf32>
    %17 = tpu.matmul %15, %16, %cst_7 {dimension_numbers = #tpu.dot_dimension_numbers<[1], [0], [0], [1], [0, 0, 1, 1], [], []>} : vector<16x64xbf16>, vector<64x128xbf16>, vector<16x128xf32> -> vector<16x128xf32>
    %c0_8 = arith.constant 0 : index
    %c0_9 = arith.constant 0 : index
    %18 = vector.load %arg5[%c0_8, %c0_9] : memref<64x128xbf16, #tpu.memory_space<vmem>>, vector<64x128xbf16>
    %cst_10 = arith.constant dense<0.000000e+00> : vector<16x128xf32>
    %19 = tpu.matmul %15, %18, %cst_10 {dimension_numbers = #tpu.dot_dimension_numbers<[1], [0], [0], [1], [0, 0, 1, 1], [], []>} : vector<16x64xbf16>, vector<64x128xbf16>, vector<16x128xf32> -> vector<16x128xf32>
    %20 = arith.negf %17 : vector<16x128xf32>
    %21 = math.exp %20 : vector<16x128xf32>
    %cst_11 = arith.constant 1.000000e+00 : f32
    %22 = vector.broadcast %cst_11 : f32 to vector<16x128xf32>
    %23 = arith.addf %22, %21 : vector<16x128xf32>
    %24 = arith.divf %22, %23 : vector<16x128xf32>
    %25 = arith.mulf %17, %24 : vector<16x128xf32>
    %26 = arith.mulf %25, %19 : vector<16x128xf32>
    %27 = arith.truncf %26 : vector<16x128xf32> to vector<16x128xbf16>
    %c0_i32 = arith.constant 0 : i32
    %28 = arith.cmpi eq, %arg1, %c0_i32 : i32
    %29 = arith.extui %28 : i1 to i32
    %c0_i32_12 = arith.constant 0 : i32
    %30 = arith.cmpi ne, %29, %c0_i32_12 : i32
    scf.if %30 {
      %cst_22 = arith.constant 0.000000e+00 : f32
      %39 = vector.broadcast %cst_22 : f32 to vector<16x64xf32>
      %c0_23 = arith.constant 0 : index
      %c0_24 = arith.constant 0 : index
      %40 = vector.load %arg8[%c0_23, %c0_24] : memref<16x64xf32, #tpu.memory_space<vmem>>, vector<16x64xf32>
      tpu.vector_store %arg8[%c0_23, %c0_24], %39 {strides = array<i32>} : memref<16x64xf32, #tpu.memory_space<vmem>>, vector<16x64xf32>,
    } else {
    }
    %c0_13 = arith.constant 0 : index
    %c0_14 = arith.constant 0 : index
    %31 = vector.load %arg8[%c0_13, %c0_14] : memref<16x64xf32, #tpu.memory_space<vmem>>, vector<16x64xf32>
    %c0_15 = arith.constant 0 : index
    %c0_16 = arith.constant 0 : index
    %32 = vector.load %arg6[%c0_15, %c0_16] : memref<128x64xbf16, #tpu.memory_space<vmem>>, vector<128x64xbf16>
    %cst_17 = arith.constant dense<0.000000e+00> : vector<16x64xf32>
    %33 = tpu.matmul %27, %32, %cst_17 {dimension_numbers = #tpu.dot_dimension_numbers<[1], [0], [0], [1], [0, 0, 1, 1], [], []>} : vector<16x128xbf16>, vector<128x64xbf16>, vector<16x64xf32> -> vector<16x64xf32>
    %34 = arith.addf %31, %33 : vector<16x64xf32>
    %c0_18 = arith.constant 0 : index
    %c0_19 = arith.constant 0 : index
    %35 = vector.load %arg8[%c0_18, %c0_19] : memref<16x64xf32, #tpu.memory_space<vmem>>, vector<16x64xf32>
    tpu.vector_store %arg8[%c0_18, %c0_19], %34 {strides = array<i32>} : memref<16x64xf32, #tpu.memory_space<vmem>>, vector<16x64xf32>,
    %c0_i32_20 = arith.constant 0 : i32
    %36 = arith.cmpi eq, %arg1, %c0_i32_20 : i32
    %37 = arith.extui %36 : i1 to i32
    %c0_i32_21 = arith.constant 0 : i32
    %38 = arith.cmpi ne, %37, %c0_i32_21 : i32
    scf.if %38 {
      %c0_22 = arith.constant 0 : index
      %c0_23 = arith.constant 0 : index
      %39 = vector.load %arg8[%c0_22, %c0_23] : memref<16x64xf32, #tpu.memory_space<vmem>>, vector<16x64xf32>
      %40 = arith.addf %39, %1 : vector<16x64xf32>
      %41 = arith.truncf %40 : vector<16x64xf32> to vector<16x64xbf16>
      %c0_24 = arith.constant 0 : index
      %c0_25 = arith.constant 0 : index
      %42 = vector.load %arg7[%c0_24, %c0_25] : memref<16x64xbf16, #tpu.memory_space<vmem>>, vector<16x64xbf16>
      tpu.vector_store %arg7[%c0_24, %c0_25], %41 {strides = array<i32>} : memref<16x64xbf16, #tpu.memory_space<vmem>>, vector<16x64xbf16>,
    } else {
    }
    return
  }
  func.func @transform_0(%arg0: i32, %arg1: i32) -> (i32, i32) {
    %c0_i32 = arith.constant 0 : i32
    %c0_i32_0 = arith.constant 0 : i32
    return %arg0, %c0_i32 : i32, i32
  }
  func.func @transform_1(%arg0: i32, %arg1: i32) -> (i32, i32) {
    %c0_i32 = arith.constant 0 : i32
    %c0_i32_0 = arith.constant 0 : i32
    %c0_i32_1 = arith.constant 0 : i32
    return %c0_i32, %c0_i32_0 : i32, i32
  }
  func.func @transform_2(%arg0: i32, %arg1: i32) -> (i32, i32) {
    %c0_i32 = arith.constant 0 : i32
    %c0_i32_0 = arith.constant 0 : i32
    return %c0_i32, %arg1 : i32, i32
  }
  func.func @transform_3(%arg0: i32, %arg1: i32) -> (i32, i32) {
    %c0_i32 = arith.constant 0 : i32
    %c0_i32_0 = arith.constant 0 : i32
    return %c0_i32, %arg1 : i32, i32
  }
  func.func @transform_4(%arg0: i32, %arg1: i32) -> (i32, i32) {
    %c0_i32 = arith.constant 0 : i32
    %c0_i32_0 = arith.constant 0 : i32
    return %arg1, %c0_i32 : i32, i32
  }
  func.func @transform_5(%arg0: i32, %arg1: i32) -> (i32, i32) {
    %c0_i32 = arith.constant 0 : i32
    %c0_i32_0 = arith.constant 0 : i32
    return %arg0, %c0_i32 : i32, i32
  }
}

module attributes {stable_mosaic.version = 11 : i64} {
  func.func @_norm_matmul_kernel(%arg0: i32, %arg1: i32, %arg2: memref<16x64xbf16, #tpu.memory_space<vmem>>, %arg3: memref<1x64xf32, #tpu.memory_space<vmem>>, %arg4: memref<64x256xbf16, #tpu.memory_space<vmem>>, %arg5: memref<16x256xbf16, #tpu.memory_space<vmem>>) attributes {dimension_semantics = [#tpu.dimension_semantics<parallel>, #tpu.dimension_semantics<parallel>], iteration_bounds = array<i64: 1, 1>, scalar_prefetch = 0 : i64, scratch_operands = 0 : i64, tpu.core_type = #tpu.core_type<tc>, window_params = [{transform_indices = @transform_0, window_bounds = array<i64: 16, 64>}, {pipeline_mode = #tpu.pipeline_mode<synchronous>, transform_indices = @transform_1, window_bounds = array<i64: 1, 64>}, {transform_indices = @transform_2, window_bounds = array<i64: 64, 256>}, {transform_indices = @transform_3, window_bounds = array<i64: 16, 256>}]} {
    %c0 = arith.constant 0 : index
    %c0_0 = arith.constant 0 : index
    %0 = vector.load %arg2[%c0, %c0_0] : memref<16x64xbf16, #tpu.memory_space<vmem>>, vector<16x64xbf16>
    %1 = arith.extf %0 : vector<16x64xbf16> to vector<16x64xf32>
    %c0_1 = arith.constant 0 : index
    %c0_2 = arith.constant 0 : index
    %2 = vector.load %arg3[%c0_1, %c0_2] : memref<1x64xf32, #tpu.memory_space<vmem>>, vector<1x64xf32>
    %3 = arith.mulf %1, %1 : vector<16x64xf32>
    %cst = arith.constant dense<0.000000e+00> : vector<16xf32>
    %4 = vector.multi_reduction <add>, %3, %cst [1] : vector<16x64xf32> to vector<16xf32>
    %5 = vector.shape_cast %4 : vector<16xf32> to vector<16x1xf32>
    %cst_3 = arith.constant 6.400000e+01 : f32
    %6 = vector.broadcast %cst_3 : f32 to vector<16x1xf32>
    %7 = arith.divf %5, %6 : vector<16x1xf32>
    %cst_4 = arith.constant 9.99999974E-6 : f32
    %8 = vector.broadcast %cst_4 : f32 to vector<16x1xf32>
    %9 = arith.addf %7, %8 : vector<16x1xf32>
    %10 = math.rsqrt %9 : vector<16x1xf32>
    %11 = vector.broadcast %10 : vector<16x1xf32> to vector<16x64xf32>
    %12 = arith.mulf %1, %11 : vector<16x64xf32>
    %13 = vector.broadcast %2 : vector<1x64xf32> to vector<16x64xf32>
    %14 = arith.mulf %12, %13 : vector<16x64xf32>
    %15 = arith.truncf %14 : vector<16x64xf32> to vector<16x64xbf16>
    %c0_5 = arith.constant 0 : index
    %c0_6 = arith.constant 0 : index
    %16 = vector.load %arg4[%c0_5, %c0_6] : memref<64x256xbf16, #tpu.memory_space<vmem>>, vector<64x256xbf16>
    %cst_7 = arith.constant dense<0.000000e+00> : vector<16x256xf32>
    %17 = tpu.matmul %15, %16, %cst_7 {dimension_numbers = #tpu.dot_dimension_numbers<[1], [0], [0], [1], [0, 0, 1, 1], [], []>} : vector<16x64xbf16>, vector<64x256xbf16>, vector<16x256xf32> -> vector<16x256xf32>
    %18 = arith.truncf %17 : vector<16x256xf32> to vector<16x256xbf16>
    %c0_8 = arith.constant 0 : index
    %c0_9 = arith.constant 0 : index
    %19 = vector.load %arg5[%c0_8, %c0_9] : memref<16x256xbf16, #tpu.memory_space<vmem>>, vector<16x256xbf16>
    tpu.vector_store %arg5[%c0_8, %c0_9], %18 {strides = array<i32>} : memref<16x256xbf16, #tpu.memory_space<vmem>>, vector<16x256xbf16>,
    return
  }
  func.func @transform_0(%arg0: i32, %arg1: i32) -> (i32, i32) {
    %c0_i32 = arith.constant 0 : i32
    %c0_i32_0 = arith.constant 0 : i32
    return %arg0, %c0_i32 : i32, i32
  }
  func.func @transform_1(%arg0: i32, %arg1: i32) -> (i32, i32) {
    %c0_i32 = arith.constant 0 : i32
    %c0_i32_0 = arith.constant 0 : i32
    %c0_i32_1 = arith.constant 0 : i32
    return %c0_i32, %c0_i32_0 : i32, i32
  }
  func.func @transform_2(%arg0: i32, %arg1: i32) -> (i32, i32) {
    %c0_i32 = arith.constant 0 : i32
    %c0_i32_0 = arith.constant 0 : i32
    return %c0_i32, %arg1 : i32, i32
  }
  func.func @transform_3(%arg0: i32, %arg1: i32) -> (i32, i32) {
    %c0_i32 = arith.constant 0 : i32
    return %arg0, %arg1 : i32, i32
  }
}

</mosaic_0001>

<llo_original>
// kernel: fwd.9
$region0: #{fwd.9}
  #allocation0 [shape = 'u32[]', space=smem, size = 0x4, offset = 0x4, fixed_abs, tag = 'smem constant byte address 0x4 - core index']
  #allocation1 [shape = 'u32[144,128]{1,0:T(1,128)}', space=vmem, size = 0x12000, scoped, tag = 'internal scratch']
  %s0 = inlined_call_operand.vmem [shape: bf16[16,64], index: 0, kind: input, shape index: {}]
  %s1 = inlined_call_operand.vmem [shape: f32[1,64], index: 1, kind: input, shape index: {}]
  %s2 = inlined_call_operand.vmem [shape: bf16[64,128], index: 2, kind: input, shape index: {}]
  %s3 = inlined_call_operand.vmem [shape: bf16[16,128], index: 3, kind: output, shape index: {}]
  %s4 = sld [smem:[#allocation0]]
  $region22: #{fwd.9} parent=0
    _
  %s6 = ssub.s32 1, %s4
  %s7 = scalar_select 0, %s6, %s4
  // Predicated region
  $region2: #{fwd.9} parent=0 // pred_check
    _
  $region3: #{fwd.9} parent=0 // pred_check_branch
    %9 = sbr.rel (0) target = $region5
  $region4: #{fwd.9} parent=0 // pred_region
    _
  $region5: #{fwd.9} parent=0 // pred_fallthru
    _
  // Predicated region
  $region6: #{fwd.9} parent=0 // pred_check
    _
  $region7: #{fwd.9} parent=0 // pred_check_branch
    %11 = sbr.rel (0) target = $region9
  $region8: #{fwd.9} parent=0 // pred_region
    _
  $region9: #{fwd.9} parent=0 // pred_fallthru
    _
  // Predicated region
  $region10: #{fwd.9} parent=0 // pred_check
    _
  $region11: #{fwd.9} parent=0 // pred_check_branch
    %13 = sbr.rel (0) target = $region13
  $region12: #{fwd.9} parent=0 // pred_region
    _
  $region13: #{fwd.9} parent=0 // pred_fallthru
    _
  %v15 = vld [vmem:[%s0] sm:$0xf]
  %v16 = vld [vmem:[%s0 + $0x4] sm:$0xf]
  %v17 = vunpack.c.l.bf16 %v15
  %v18 = vunpack.c.l.bf16 %v16
  %v19 = vld [vmem:[%s1] sm:$0x1]
  %v20 = vmul.f32 %v17, %v17
  %v21 = vmul.f32 %v18, %v18
  %vm22 = vcmask 523264
  %v23 = vsel %vm22, %v20, 0.0
  %24 = vadd.xlane.f32.xlu0 %v23
  %v25 = vpop.xlane.xlu0 %24
  %v26 = vsel %vm22, %v21, 0.0
  %27 = vadd.xlane.f32.xlu0 %v26
  %v28 = vpop.xlane.xlu0 %27
  %v29 = vrcp.pop 64.0
  %v30 = vmul.f32 %v25, %v29
  %v31 = vmul.f32 %v28, %v29
  %v32 = vadd.f32 %v30, 1e-05
  %v33 = vadd.f32 %v31, 1e-05
  %v34 = vrsqrt.pop %v32
  %v35 = vrsqrt.pop %v33
  %v36 = vmul.f32 %v17, %v34
  %v37 = vmul.f32 %v18, %v35
  %v39 = vlaneseq
  %v40 = vshrl.u32 %v39, 7
  %v41 = vsub.s32 0, %v40
  %v42 = vrot.slane %v19, %v41
  %v44 = vmul.f32 %v36, %v42
  %v45 = vmul.f32 %v37, %v42
  %v46 = vpack.c.bf16 %v45, %v44
  %v47 = vld [vmem:[%s2] sm:$0xf]
  %v48 = vld [vmem:[%s2 + $0x4] sm:$0xf]
  %v49 = vld [vmem:[%s2 + $0x8] sm:$0xf]
  %v50 = vld [vmem:[%s2 + $0xc] sm:$0xf]
  %v51 = vld [vmem:[%s2 + $0x10] sm:$0xf]
  %v52 = vld [vmem:[%s2 + $0x14] sm:$0xf]
  %v53 = vld [vmem:[%s2 + $0x18] sm:$0xf]
  %v54 = vld [vmem:[%s2 + $0x1c] sm:$0xf]
  %v63 = vunpack.c.l.b16 %v47
  %v64 = vunpack.c.l.b16 %v48
  %v65 = vunpack.c.l.b16 %v49
  %v66 = vunpack.c.l.b16 %v50
  %v67 = vunpack.c.l.b16 %v51
  %v68 = vunpack.c.l.b16 %v52
  %v69 = vunpack.c.l.b16 %v53
  %v70 = vunpack.c.l.b16 %v54
  %v71 = vpack.c.b16 %v64, %v63
  %v72 = vpack.c.b16 %v66, %v65
  %v73 = vpack.c.b16 %v68, %v67
  %v74 = vpack.c.b16 %v70, %v69
  %v80 = vsel %vm22, %v46, 0
  %82 = vmatprep.subr.bf16.mxu0 0
  %83 = vmatpush1.bf16.msra.mxu0 0
  %84 = vmatprep.subr.bf16.mxu0 0
  %85 = vmatpush1.bf16.msra.mxu0 0
  %86 = vmatprep.subr.bf16.mxu0 0
  %87 = vmatpush1.bf16.msra.mxu0 0
  %88 = vmatprep.subr.bf16.mxu0 0
  %89 = vmatpush1.bf16.msra.mxu0 0
  %90 = vmatprep.subr.bf16.mxu0 0
  %91 = vmatpush1.bf16.msra.mxu0 %v74
  %92 = vmatprep.subr.bf16.mxu0 0
  %93 = vmatpush1.bf16.msra.mxu0 %v73
  %94 = vmatprep.subr.bf16.mxu0 0
  %95 = vmatpush1.bf16.msra.mxu0 %v72
  %96 = vmatprep.subr.bf16.mxu0 0
  %97 = vmatpush1.bf16.msra.mxu0 %v71
  %98 = vmatprep.subr.bf16.mxu0 0
  %99 = vmatpush2.bf16.msra.mxu0 0
  %100 = vmatprep.subr.bf16.mxu0 0
  %101 = vmatpush2.bf16.msra.mxu0 0
  %102 = vmatprep.subr.bf16.mxu0 0
  %103 = vmatpush2.bf16.msra.mxu0 0
  %104 = vmatprep.subr.bf16.mxu0 0
  %105 = vmatpush2.bf16.msra.mxu0 0
  %106 = vmatprep.subr.bf16.mxu0 0
  %107 = vmatpush2.bf16.msra.mxu0 0
  %108 = vmatprep.subr.bf16.mxu0 0
  %109 = vmatpush2.bf16.msra.mxu0 0
  %110 = vmatprep.subr.bf16.mxu0 0
  %111 = vmatpush2.bf16.msra.mxu0 0
  %112 = vmatprep.subr.bf16.mxu0 0
  %113 = vmatpush2.bf16.msra.mxu0 0
  %114 = vmatprep.mubr.bf16.mxu0 0
  %115 = vmatmul.mubr.bf16.gmra.mxu0 %v80
  %v116 = vpop.f32.mrf.mxu0
  %v117 = vadd.f32 0.0, %v116
  %v118 = vpop.f32.mrf.mxu0
  %v119 = vpop.f32.mrf.mxu0
  %v120 = vadd.f32 0.0, %v119
  %v121 = vpop.f32.mrf.mxu0
  %122 = vdwg.mxu0
  %v123 = vpack.c.bf16 %v120, %v117
  %v125 = vunpack.c.l.b16 %v123
  %v126 = vunpack.c.h.b16 %v123
  %v127 = vpack.c.b16 %v125, %v125
  %v128 = vpack.c.b16 %v126, %v126
  %131 = vst [vmem:[%s3] sm:$0xf] %v127
  %132 = vst [vmem:[%s3 + $0x4] sm:$0xf] %v128
  // Predicated region
  $region14: #{fwd.9} parent=0 // pred_check
    _
  $region15: #{fwd.9} parent=0 // pred_check_branch
    %134 = sbr.rel (0) target = $region17
  $region16: #{fwd.9} parent=0 // pred_region
    _
  $region17: #{fwd.9} parent=0 // pred_fallthru
    _
  // Predicated region
  $region18: #{fwd.9} parent=0 // pred_check
    _
  $region19: #{fwd.9} parent=0 // pred_check_branch
    %136 = sbr.rel (0) target = $region21
  $region20: #{fwd.9} parent=0 // pred_region
    _
  $region21: #{fwd.9} parent=0 // pred_fallthru
    _

// kernel: fwd.11
$region0: #{fwd.11}
  #allocation0 [shape = 'u32[]', space=smem, size = 0x4, offset = 0x4, fixed_abs, tag = 'smem constant byte address 0x4 - core index']
  #allocation1 [shape = 'u32[144,128]{1,0:T(1,128)}', space=vmem, size = 0x12000, scoped, tag = 'internal scratch']
  #allocation2 [shape = 'f32[16,64]{1,0:T(8,128)}', space=vmem, size = 0x2000, scoped, tag = 'scratch operand']
  %s0 = inlined_call_operand.vmem [shape: bf16[16,64], index: 0, kind: input, shape index: {}]
  %s1 = inlined_call_operand.vmem [shape: bf16[64,64], index: 1, kind: input, shape index: {}]
  %s2 = inlined_call_operand.vmem [shape: bf16[16,64], index: 2, kind: input, shape index: {}]
  %s3 = inlined_call_operand.vmem [shape: bf16[16,64], index: 3, kind: output, shape index: {}]
  %s4 = sld [smem:[#allocation0]]
  $region30: #{fwd.11} parent=0
    _
  %s6 = ssub.s32 1, %s4
  %s7 = scalar_select 0, %s6, %s4
  // Predicated region
  $region2: #{fwd.11} parent=0 // pred_check
    _
  $region3: #{fwd.11} parent=0 // pred_check_branch
    %9 = sbr.rel (0) target = $region5
  $region4: #{fwd.11} parent=0 // pred_region
    _
  $region5: #{fwd.11} parent=0 // pred_fallthru
    _
  // Predicated region
  $region6: #{fwd.11} parent=0 // pred_check
    _
  $region7: #{fwd.11} parent=0 // pred_check_branch
    %11 = sbr.rel (0) target = $region9
  $region8: #{fwd.11} parent=0 // pred_region
    _
  $region9: #{fwd.11} parent=0 // pred_fallthru
    _
  // Predicated region
  $region10: #{fwd.11} parent=0 // pred_check
    _
  $region11: #{fwd.11} parent=0 // pred_check_branch
    %13 = sbr.rel (0) target = $region13
  $region12: #{fwd.11} parent=0 // pred_region
    _
  $region13: #{fwd.11} parent=0 // pred_fallthru
    _
  %p15 = scmp.eq.s32.totalorder 0, 0
  // Predicated region
  $region14: #{fwd.11} parent=0 // pred_check
    %p16 = pneg %p15
  $region15: #{fwd.11} parent=0 // pred_check_branch
    %18 = sbr.rel (%p16) target = $region17
  $region16: #{fwd.11} parent=0 // pred_region
    %vm19 = vcmask 523264
    %20 = vst.msk [vmem:[#allocation2] sm:$0xff] %vm19, 0.0
    %21 = vst.msk [vmem:[#allocation2 + $0x8] sm:$0xff] %vm19, 0.0
  $region17: #{fwd.11} parent=0 // pred_fallthru
    _
  %v22 = vld [vmem:[#allocation2] sm:$0xff]
  %v23 = vld [vmem:[#allocation2 + $0x8] sm:$0xff]
  %v24 = vld [vmem:[%s0] sm:$0xf]
  %v25 = vld [vmem:[%s0 + $0x4] sm:$0xf]
  %v26 = vld [vmem:[%s1] sm:$0xf]
  %v27 = vld [vmem:[%s1 + $0x4] sm:$0xf]
  %v28 = vld [vmem:[%s1 + $0x8] sm:$0xf]
  %v29 = vld [vmem:[%s1 + $0xc] sm:$0xf]
  %v30 = vld [vmem:[%s1 + $0x10] sm:$0xf]
  %v31 = vld [vmem:[%s1 + $0x14] sm:$0xf]
  %v32 = vld [vmem:[%s1 + $0x18] sm:$0xf]
  %v33 = vld [vmem:[%s1 + $0x1c] sm:$0xf]
  %v36 = vunpack.c.l.b16 %v24
  %v37 = vunpack.c.l.b16 %v25
  %v38 = vpack.c.b16 %v37, %v36
  %v47 = vunpack.c.l.b16 %v26
  %v48 = vunpack.c.l.b16 %v27
  %v49 = vunpack.c.l.b16 %v28
  %v50 = vunpack.c.l.b16 %v29
  %v51 = vunpack.c.l.b16 %v30
  %v52 = vunpack.c.l.b16 %v31
  %v53 = vunpack.c.l.b16 %v32
  %v54 = vunpack.c.l.b16 %v33
  %v55 = vpack.c.b16 %v48, %v47
  %v56 = vpack.c.b16 %v50, %v49
  %v57 = vpack.c.b16 %v52, %v51
  %v58 = vpack.c.b16 %v54, %v53
  %vm63 = vcmask 523264
  %v65 = vsel %vm63, %v38, 0
  %67 = vmatprep.subr.bf16.mxu0 0
  %68 = vmatpush1.bf16.msra.mxu0 0
  %69 = vmatprep.subr.bf16.mxu0 0
  %70 = vmatpush1.bf16.msra.mxu0 0
  %71 = vmatprep.subr.bf16.mxu0 0
  %72 = vmatpush1.bf16.msra.mxu0 0
  %73 = vmatprep.subr.bf16.mxu0 0
  %74 = vmatpush1.bf16.msra.mxu0 0
  %75 = vmatprep.subr.bf16.mxu0 0
  %76 = vmatpush1.bf16.msra.mxu0 %v58
  %77 = vmatprep.subr.bf16.mxu0 0
  %78 = vmatpush1.bf16.msra.mxu0 %v57
  %79 = vmatprep.subr.bf16.mxu0 0
  %80 = vmatpush1.bf16.msra.mxu0 %v56
  %81 = vmatprep.subr.bf16.mxu0 0
  %82 = vmatpush1.bf16.msra.mxu0 %v55
  %83 = vmatprep.subr.bf16.mxu0 0
  %84 = vmatpush2.bf16.msra.mxu0 0
  %85 = vmatprep.subr.bf16.mxu0 0
  %86 = vmatpush2.bf16.msra.mxu0 0
  %87 = vmatprep.subr.bf16.mxu0 0
  %88 = vmatpush2.bf16.msra.mxu0 0
  %89 = vmatprep.subr.bf16.mxu0 0
  %90 = vmatpush2.bf16.msra.mxu0 0
  %91 = vmatprep.subr.bf16.mxu0 0
  %92 = vmatpush2.bf16.msra.mxu0 0
  %93 = vmatprep.subr.bf16.mxu0 0
  %94 = vmatpush2.bf16.msra.mxu0 0
  %95 = vmatprep.subr.bf16.mxu0 0
  %96 = vmatpush2.bf16.msra.mxu0 0
  %97 = vmatprep.subr.bf16.mxu0 0
  %98 = vmatpush2.bf16.msra.mxu0 0
  %99 = vmatprep.mubr.bf16.mxu0 0
  %100 = vmatmul.mubr.bf16.gmra.mxu0 %v65
  %v101 = vpop.f32.mrf.mxu0
  %v102 = vadd.f32 0.0, %v101
  %v103 = vpop.f32.mrf.mxu0
  %v104 = vpop.f32.mrf.mxu0
  %v105 = vadd.f32 0.0, %v104
  %v106 = vpop.f32.mrf.mxu0
  %107 = vdwg.mxu0
  %v108 = vadd.f32 %v22, %v102
  %v109 = vadd.f32 %v23, %v105
  %110 = vst.msk [vmem:[#allocation2] sm:$0xff] %vm63, %v108
  %111 = vst.msk [vmem:[#allocation2 + $0x8] sm:$0xff] %vm63, %v109
  // Predicated region
  $region18: #{fwd.11} parent=0 // pred_check
    %p112 = pneg %p15
  $region19: #{fwd.11} parent=0 // pred_check_branch
    %114 = sbr.rel (%p112) target = $region21
  $region20: #{fwd.11} parent=0 // pred_region
    %v115 = vld [vmem:[#allocation2] sm:$0xff]
    %v116 = vld [vmem:[#allocation2 + $0x8] sm:$0xff]
    %v117 = vld [vmem:[%s2] sm:$0xf]
    %v118 = vld [vmem:[%s2 + $0x4] sm:$0xf]
    %v119 = vunpack.c.l.bf16 %v117
    %v120 = vunpack.c.l.bf16 %v118
    %v121 = vadd.f32 %v115, %v119
    %v122 = vadd.f32 %v116, %v120
    %v123 = vpack.c.bf16 %v122, %v121
    %v125 = vunpack.c.l.b16 %v123
    %v126 = vunpack.c.h.b16 %v123
    %v127 = vpack.c.b16 %v125, %v125
    %v128 = vpack.c.b16 %v126, %v126
    %vm131 = vcmask 519168
    %132 = vst.msk [vmem:[%s3] sm:$0xf] %vm131, %v127
    %133 = vst.msk [vmem:[%s3 + $0x4] sm:$0xf] %vm131, %v128
  $region21: #{fwd.11} parent=0 // pred_fallthru
    _
  // Predicated region
  $region22: #{fwd.11} parent=0 // pred_check
    _
  $region23: #{fwd.11} parent=0 // pred_check_branch
    %135 = sbr.rel (0) target = $region25
  $region24: #{fwd.11} parent=0 // pred_region
    _
  $region25: #{fwd.11} parent=0 // pred_fallthru
    _
  // Predicated region
  $region26: #{fwd.11} parent=0 // pred_check
    _
  $region27: #{fwd.11} parent=0 // pred_check_branch
    %137 = sbr.rel (0) target = $region29
  $region28: #{fwd.11} parent=0 // pred_region
    _
  $region29: #{fwd.11} parent=0 // pred_fallthru
    _

// kernel: fwd.10
$region0: #{fwd.10}
  #allocation0 [shape = 'u32[]', space=smem, size = 0x4, offset = 0x4, fixed_abs, tag = 'smem constant byte address 0x4 - core index']
  #allocation1 [shape = 'u32[144,128]{1,0:T(1,128)}', space=vmem, size = 0x12000, scoped, tag = 'internal scratch']
  %s0 = inlined_call_operand.vmem [shape: bf16[2,8,64], index: 0, kind: input, shape index: {}]
  %s1 = inlined_call_operand.vmem [shape: bf16[2,8,32], index: 1, kind: input, shape index: {}]
  %s2 = inlined_call_operand.vmem [shape: bf16[2,8,32], index: 2, kind: input, shape index: {}]
  %s3 = inlined_call_operand.vmem [shape: bf16[2,8,64], index: 3, kind: output, shape index: {}]
  %s4 = sld [smem:[#allocation0]]
  $region45: #{fwd.10} parent=0
    _
  %s6 = ssub.s32 1, %s4
  %s7 = scalar_select 0, %s6, %s4
  loop: start=0, step=1, limit=4
  $region2: #{fwd.10} parent=0 // loop_pre_header
    _
  $region3: #{fwd.10} parent=0 // loop_header
    %s9 = sphi 0, %s13
    %p10 = scmp.ge.s32.totalorder %s9, 4
    %s19 = sphi 0, %s21
    %s22 = sphi 0, %s19
    %s23 = sphi 0, %s22
    %s39 = sphi 0, %s23
    %s45 = sphi 0, %s47
    %s48 = sphi 0, %s45
    %s49 = sphi 0, %s48
    %s65 = sphi 0, %s49
    %s71 = sphi 0, %s73
    %s74 = sphi 0, %s71
    %s75 = sphi 0, %s74
    %s91 = sphi 0, %s75
    %s97 = sphi 0, %s99
    %s100 = sphi 0, %s97
    %s101 = sphi 0, %s100
    %s117 = sphi 0, %s101
  $region4: #{fwd.10} parent=0 // loop_header_branch
    %12 = sbr.rel (%p10) target = $region8
  $region5: #{fwd.10} parent=0 // loop_body
    %s14 = ssub.s32 %s9, 1
    %s15 = ssub.s32 %s9, 2
    %s16 = sadd.s32 %s9, 1
    %s17 = ssub.s32 %s9, %s16
    %p18 = scmp.eq.s32.totalorder %s17, 0
    %s20 = sadd.s32 %s19, 1
    %s21 = scalar_select %p18, %s19, %s20
    %p24 = pneg %p18
    %p25 = scmp.eq.s32.totalorder %s9, 1
    %p26 = por %p24, %p25
    %p27 = scmp.ne.s32.totalorder %s19, %s22
    %p28 = scmp.eq.s32.totalorder %s9, 0
    %p29 = por %p27, %p28
    %p30 = scmp.ne.s32.totalorder %s19, %s22
    %p31 = scmp.eq.s32.totalorder %s14, 1
    %p32 = por %p30, %p31
    %p33 = scmp.ne.s32.totalorder %s22, %s23
    %p34 = scmp.eq.s32.totalorder %s14, 0
    %p35 = por %p33, %p34
    %p36 = scmp.ne.s32.totalorder %s22, %s23
    %p37 = scmp.eq.s32.totalorder %s15, 1
    %p38 = por %p36, %p37
    %p40 = scmp.ne.s32.totalorder %s23, %s39
    %p41 = scmp.eq.s32.totalorder %s15, 0
    %p42 = por %p40, %p41
    %s43 = ssub.s32 %s9, %s16
    %p44 = scmp.eq.s32.totalorder %s43, 0
    %s46 = sadd.s32 %s45, 1
    %s47 = scalar_select %p44, %s45, %s46
    %p50 = pneg %p44
    %p51 = scmp.eq.s32.totalorder %s9, 1
    %p52 = por %p50, %p51
    %p53 = scmp.ne.s32.totalorder %s45, %s48
    %p54 = scmp.eq.s32.totalorder %s9, 0
    %p55 = por %p53, %p54
    %p56 = scmp.ne.s32.totalorder %s45, %s48
    %p57 = scmp.eq.s32.totalorder %s14, 1
    %p58 = por %p56, %p57
    %p59 = scmp.ne.s32.totalorder %s48, %s49
    %p60 = scmp.eq.s32.totalorder %s14, 0
    %p61 = por %p59, %p60
    %p62 = scmp.ne.s32.totalorder %s48, %s49
    %p63 = scmp.eq.s32.totalorder %s15, 1
    %p64 = por %p62, %p63
    %p66 = scmp.ne.s32.totalorder %s49, %s65
    %p67 = scmp.eq.s32.totalorder %s15, 0
    %p68 = por %p66, %p67
    %s69 = ssub.s32 %s9, %s16
    %p70 = scmp.eq.s32.totalorder %s69, 0
    %s72 = sadd.s32 %s71, 1
    %s73 = scalar_select %p70, %s71, %s72
    %p76 = pneg %p70
    %p77 = scmp.eq.s32.totalorder %s9, 1
    %p78 = por %p76, %p77
    %p79 = scmp.ne.s32.totalorder %s71, %s74
    %p80 = scmp.eq.s32.totalorder %s9, 0
    %p81 = por %p79, %p80
    %p82 = scmp.ne.s32.totalorder %s71, %s74
    %p83 = scmp.eq.s32.totalorder %s14, 1
    %p84 = por %p82, %p83
    %p85 = scmp.ne.s32.totalorder %s74, %s75
    %p86 = scmp.eq.s32.totalorder %s14, 0
    %p87 = por %p85, %p86
    %p88 = scmp.ne.s32.totalorder %s74, %s75
    %p89 = scmp.eq.s32.totalorder %s15, 1
    %p90 = por %p88, %p89
    %p92 = scmp.ne.s32.totalorder %s75, %s91
    %p93 = scmp.eq.s32.totalorder %s15, 0
    %p94 = por %p92, %p93
    %s95 = ssub.s32 %s9, %s16
    %p96 = scmp.eq.s32.totalorder %s95, 0
    %s98 = sadd.s32 %s97, 1
    %s99 = scalar_select %p96, %s97, %s98
    %p102 = pneg %p96
    %p103 = scmp.eq.s32.totalorder %s9, 1
    %p104 = por %p102, %p103
    %p105 = scmp.ne.s32.totalorder %s97, %s100
    %p106 = scmp.eq.s32.totalorder %s9, 0
    %p107 = por %p105, %p106
    %p108 = scmp.ne.s32.totalorder %s97, %s100
    %p109 = scmp.eq.s32.totalorder %s14, 1
    %p110 = por %p108, %p109
    %p111 = scmp.ne.s32.totalorder %s100, %s101
    %p112 = scmp.eq.s32.totalorder %s14, 0
    %p113 = por %p111, %p112
    %p114 = scmp.ne.s32.totalorder %s100, %s101
    %p115 = scmp.eq.s32.totalorder %s15, 1
    %p116 = por %p114, %p115
    %p118 = scmp.ne.s32.totalorder %s101, %s117
    %p119 = scmp.eq.s32.totalorder %s15, 0
    %p120 = por %p118, %p119
    %p121 = scmp.le.s32.totalorder 1, %s9
    %p122 = scmp.lt.s32.totalorder %s9, 3
    %p123 = pnand %p121, %p122
    %p124 = pneg %p123
    // Predicated region
    $region9: #{fwd.10} parent=5 // pred_check
      _
    $region10: #{fwd.10} parent=5 // pred_check_branch
      %126 = sbr.rel (%p123) target = $region12
    $region11: #{fwd.10} parent=5 // pred_region
      %s127 = ssub.s32 %s9, 1
    $region12: #{fwd.10} parent=5 // pred_fallthru
      _
    %p128 = scmp.lt.s32.totalorder %s9, 2
    // Predicated region
    $region13: #{fwd.10} parent=5 // pred_check
      %p129 = pneg %p128
    $region14: #{fwd.10} parent=5 // pred_check_branch
      %131 = sbr.rel (%p129) target = $region16
    $region15: #{fwd.10} parent=5 // pred_region
      // Predicated region
      $region17: #{fwd.10} parent=15 // pred_check
        %p132 = pneg %p29
      $region18: #{fwd.10} parent=15 // pred_check_branch
        %134 = sbr.rel (%p132) target = $region20
      $region19: #{fwd.10} parent=15 // pred_region
        %p135 = scmp.lt.s32.totalorder %s9, 1
        %s136 = scalar_select %p135, %s9, 1
        %s137 = smul.addr %s136, 4
        %s138 = scalar_lea.vmem %s0, %s137
      $region20: #{fwd.10} parent=15 // pred_fallthru
        _
      // Predicated region
      $region21: #{fwd.10} parent=15 // pred_check
        %p139 = pneg %p55
      $region22: #{fwd.10} parent=15 // pred_check_branch
        %141 = sbr.rel (%p139) target = $region24
      $region23: #{fwd.10} parent=15 // pred_region
        %p142 = scmp.lt.s32.totalorder %s9, 1
        %s143 = scalar_select %p142, %s9, 1
        %s144 = smul.addr %s143, 4
        %s145 = scalar_lea.vmem %s1, %s144
      $region24: #{fwd.10} parent=15 // pred_fallthru
        _
      // Predicated region
      $region25: #{fwd.10} parent=15 // pred_check
        %p146 = pneg %p81
      $region26: #{fwd.10} parent=15 // pred_check_branch
        %148 = sbr.rel (%p146) target = $region28
      $region27: #{fwd.10} parent=15 // pred_region
        %p149 = scmp.lt.s32.totalorder %s9, 1
        %s150 = scalar_select %p149, %s9, 1
        %s151 = smul.addr %s150, 4
        %s152 = scalar_lea.vmem %s2, %s151
      $region28: #{fwd.10} parent=15 // pred_fallthru
        _
    $region16: #{fwd.10} parent=5 // pred_fallthru
      _
    %p153 = scmp.le.s32.totalorder 1, %s9
    %p154 = scmp.lt.s32.totalorder %s9, 3
    %p155 = pnand %p153, %p154
    %p156 = pneg %p155
    // Predicated region
    $region29: #{fwd.10} parent=5 // pred_check
      _
    $region30: #{fwd.10} parent=5 // pred_check_branch
      %158 = sbr.rel (%p155) target = $region32
    $region31: #{fwd.10} parent=5 // pred_region
      %s159 = ssub.s32 %s9, 1
      %p160 = scmp.lt.s32.totalorder %s14, 1
      %s161 = scalar_select %p160, %s14, 1
      %s162 = smul.addr %s161, 4
      %s163 = scalar_lea.vmem %s0, %s162
      %p164 = pneg %p35
      %p165 = pneg %p32
      %p166 = scmp.lt.s32.totalorder %s14, 1
      %s167 = scalar_select %p166, %s14, 1
      %s168 = smul.addr %s167, 4
      %s169 = scalar_lea.vmem %s1, %s168
      %p170 = pneg %p61
      %p171 = pneg %p58
      %p172 = scmp.lt.s32.totalorder %s14, 1
      %s173 = scalar_select %p172, %s14, 1
      %s174 = smul.addr %s173, 4
      %s175 = scalar_lea.vmem %s2, %s174
      %p176 = pneg %p87
      %p177 = pneg %p84
      %p178 = pneg %p113
      %p179 = pneg %p110
      %p180 = scmp.lt.s32.totalorder %s14, 1
      %s181 = scalar_select %p180, %s14, 1
      %s182 = smul.addr %s181, 4
      %s183 = scalar_lea.vmem %s3, %s182
      %p184 = scmp.lt.s32.totalorder %s14, 1
      %s185 = scalar_select %p184, %s14, 1
      %s186 = smul.addr %s185, 4
      %s187 = scalar_lea.vmem %s0, %s186
      %p188 = scmp.lt.s32.totalorder %s14, 1
      %s189 = scalar_select %p188, %s14, 1
      %s190 = smul.addr %s189, 4
      %s191 = scalar_lea.vmem %s1, %s190
      %p192 = scmp.lt.s32.totalorder %s14, 1
      %s193 = scalar_select %p192, %s14, 1
      %s194 = smul.addr %s193, 4
      %s195 = scalar_lea.vmem %s2, %s194
      %p196 = scmp.lt.s32.totalorder %s14, 1
      %s197 = scalar_select %p196, %s14, 1
      %s198 = smul.addr %s197, 4
      %s199 = scalar_lea.vmem %s3, %s198
      %v202 = vld [vmem:[%s187] sm:$0xf]
      %v203 = vld [vmem:[%s191] sm:$0xf]
      %v204 = vld [vmem:[%s195] sm:$0xf]
      %v205 = vlaneseq
      %v206 = vshrl.u32 %v205, 7
      %v207 = vlaneseq
      %v208 = vand.u32 %v207, 127
      %vm209 = vcmp.gt.s32.totalorder %v208, %v206
      %v210 = vmul.bf16 %v202, 1048592000
      %vm211 = vcmask 130048
      %v213 = vsel %vm211, %v210, 0
      %v216 = vsel %vm211, %v203, 0
      %218 = vmatprep.subr.bf16.mxu0 0
      %219 = vmatpush1.bf16.xpose.msra.mxu0 0
      %220 = vmatprep.subr.bf16.mxu0 0
      %221 = vmatpush1.bf16.xpose.msra.mxu0 0
      %222 = vmatprep.subr.bf16.mxu0 0
      %223 = vmatpush1.bf16.xpose.msra.mxu0 0
      %224 = vmatprep.subr.bf16.mxu0 0
      %225 = vmatpush1.bf16.xpose.msra.mxu0 0
      %226 = vmatprep.subr.bf16.mxu0 0
      %227 = vmatpush1.bf16.xpose.msra.mxu0 0
      %228 = vmatprep.subr.bf16.mxu0 0
      %229 = vmatpush1.bf16.xpose.msra.mxu0 0
      %230 = vmatprep.subr.bf16.mxu0 0
      %231 = vmatpush1.bf16.xpose.msra.mxu0 0
      %232 = vmatprep.subr.bf16.mxu0 0
      %233 = vmatpush1.bf16.xpose.msra.mxu0 %v216
      %234 = vmatprep.subr.bf16.mxu0 0
      %235 = vmatpush2.bf16.xpose.msra.mxu0 0
      %236 = vmatprep.subr.bf16.mxu0 0
      %237 = vmatpush2.bf16.xpose.msra.mxu0 0
      %238 = vmatprep.subr.bf16.mxu0 0
      %239 = vmatpush2.bf16.xpose.msra.mxu0 0
      %240 = vmatprep.subr.bf16.mxu0 0
      %241 = vmatpush2.bf16.xpose.msra.mxu0 0
      %242 = vmatprep.subr.bf16.mxu0 0
      %243 = vmatpush2.bf16.xpose.msra.mxu0 0
      %244 = vmatprep.subr.bf16.mxu0 0
      %245 = vmatpush2.bf16.xpose.msra.mxu0 0
      %246 = vmatprep.subr.bf16.mxu0 0
      %247 = vmatpush2.bf16.xpose.msra.mxu0 0
      %248 = vmatprep.subr.bf16.mxu0 0
      %249 = vmatpush2.bf16.xpose.msra.mxu0 0
      %250 = vmatprep.mubr.bf16.mxu0 0
      %251 = vmatmul.mubr.bf16.gmra.mxu0 %v213
      %v252 = vpop.f32.mrf.mxu0
      %v253 = vadd.f32 0.0, %v252
      %v254 = vpop.f32.mrf.mxu0
      %v255 = vpop.f32.mrf.mxu0
      %v256 = vpop.f32.mrf.mxu0
      %257 = vdwg.mxu0
      %v258 = vsel %vm209, -inf, %v253
      %vm259 = vcmask 64512
      %v260 = vsel %vm259, %v258, -inf
      %261 = vmax.xlane.f32.xlu0 %v260
      %v262 = vpop.xlane.xlu0 %261
      %v263 = vsub.f32 %v258, %v262
      %v264 = vmul.f32 %v263, 1.442695
      %v265 = vpow.pop %v264
      %v266 = vsel %vm259, %v265, 0.0
      %267 = vadd.xlane.f32.xlu0 %v266
      %v268 = vpop.xlane.xlu0 %267
      %v269 = vrcp.pop %v268
      %v270 = vmul.f32 %v265, %v269
      %v271 = vpack.c.bf16 %v270, %v270
      %v273 = vsel %vm259, %v271, 0
      %vm275 = vcmask 1043456
      %v277 = vsel %vm275, %v204, 0
      %279 = vmatprep.subr.bf16.mxu0 0
      %280 = vmatpush1.bf16.msra.mxu0 0
      %281 = vmatprep.subr.bf16.mxu0 0
      %282 = vmatpush1.bf16.msra.mxu0 0
      %283 = vmatprep.subr.bf16.mxu0 0
      %284 = vmatpush1.bf16.msra.mxu0 0
      %285 = vmatprep.subr.bf16.mxu0 0
      %286 = vmatpush1.bf16.msra.mxu0 0
      %287 = vmatprep.subr.bf16.mxu0 0
      %288 = vmatpush1.bf16.msra.mxu0 0
      %289 = vmatprep.subr.bf16.mxu0 0
      %290 = vmatpush1.bf16.msra.mxu0 0
      %291 = vmatprep.subr.bf16.mxu0 0
      %292 = vmatpush1.bf16.msra.mxu0 0
      %293 = vmatprep.subr.bf16.mxu0 0
      %294 = vmatpush1.bf16.msra.mxu0 %v277
      %295 = vmatprep.subr.bf16.mxu0 0
      %296 = vmatpush2.bf16.msra.mxu0 0
      %297 = vmatprep.subr.bf16.mxu0 0
      %298 = vmatpush2.bf16.msra.mxu0 0
      %299 = vmatprep.subr.bf16.mxu0 0
      %300 = vmatpush2.bf16.msra.mxu0 0
      %301 = vmatprep.subr.bf16.mxu0 0
      %302 = vmatpush2.bf16.msra.mxu0 0
      %303 = vmatprep.subr.bf16.mxu0 0
      %304 = vmatpush2.bf16.msra.mxu0 0
      %305 = vmatprep.subr.bf16.mxu0 0
      %306 = vmatpush2.bf16.msra.mxu0 0
      %307 = vmatprep.subr.bf16.mxu0 0
      %308 = vmatpush2.bf16.msra.mxu0 0
      %309 = vmatprep.subr.bf16.mxu0 0
      %310 = vmatpush2.bf16.msra.mxu0 0
      %311 = vmatprep.mubr.bf16.mxu0 0
      %312 = vmatmul.mubr.bf16.gmra.mxu0 %v273
      %v313 = vpop.f32.mrf.mxu0
      %v314 = vadd.f32 0.0, %v313
      %v315 = vpop.f32.mrf.mxu0
      %v316 = vpop.f32.mrf.mxu0
      %v317 = vpop.f32.mrf.mxu0
      %318 = vdwg.mxu0
      %v320 = vunpack.c.l.b16 %v210
      %v321 = vpack.c.b16 %v320, %v320
      %322 = vrot.lane.b32.xlu0 %v321, 112
      %v323 = vpop.permute.xlu0 %322
      %v325 = vsel %vm211, %v323, 0
      %327 = vmatprep.subr.bf16.mxu0 0
      %328 = vmatpush1.bf16.xpose.msra.mxu0 0
      %329 = vmatprep.subr.bf16.mxu0 0
      %330 = vmatpush1.bf16.xpose.msra.mxu0 0
      %331 = vmatprep.subr.bf16.mxu0 0
      %332 = vmatpush1.bf16.xpose.msra.mxu0 0
      %333 = vmatprep.subr.bf16.mxu0 0
      %334 = vmatpush1.bf16.xpose.msra.mxu0 0
      %335 = vmatprep.subr.bf16.mxu0 0
      %336 = vmatpush1.bf16.xpose.msra.mxu0 0
      %337 = vmatprep.subr.bf16.mxu0 0
      %338 = vmatpush1.bf16.xpose.msra.mxu0 0
      %339 = vmatprep.subr.bf16.mxu0 0
      %340 = vmatpush1.bf16.xpose.msra.mxu0 0
      %341 = vmatprep.subr.bf16.mxu0 0
      %342 = vmatpush1.bf16.xpose.msra.mxu0 %v216
      %343 = vmatprep.subr.bf16.mxu0 0
      %344 = vmatpush2.bf16.xpose.msra.mxu0 0
      %345 = vmatprep.subr.bf16.mxu0 0
      %346 = vmatpush2.bf16.xpose.msra.mxu0 0
      %347 = vmatprep.subr.bf16.mxu0 0
      %348 = vmatpush2.bf16.xpose.msra.mxu0 0
      %349 = vmatprep.subr.bf16.mxu0 0
      %350 = vmatpush2.bf16.xpose.msra.mxu0 0
      %351 = vmatprep.subr.bf16.mxu0 0
      %352 = vmatpush2.bf16.xpose.msra.mxu0 0
      %353 = vmatprep.subr.bf16.mxu0 0
      %354 = vmatpush2.bf16.xpose.msra.mxu0 0
      %355 = vmatprep.subr.bf16.mxu0 0
      %356 = vmatpush2.bf16.xpose.msra.mxu0 0
      %357 = vmatprep.subr.bf16.mxu0 0
      %358 = vmatpush2.bf16.xpose.msra.mxu0 0
      %359 = vmatprep.mubr.bf16.mxu0 0
      %360 = vmatmul.mubr.bf16.gmra.mxu0 %v325
      %v361 = vpop.f32.mrf.mxu0
      %v362 = vadd.f32 0.0, %v361
      %v363 = vpop.f32.mrf.mxu0
      %v364 = vpop.f32.mrf.mxu0
      %v365 = vpop.f32.mrf.mxu0
      %366 = vdwg.mxu0
      %v367 = vsel %vm209, -inf, %v362
      %v368 = vsel %vm259, %v367, -inf
      %369 = vmax.xlane.f32.xlu0 %v368
      %v370 = vpop.xlane.xlu0 %369
      %v371 = vsub.f32 %v367, %v370
      %v372 = vmul.f32 %v371, 1.442695
      %v373 = vpow.pop %v372
      %v374 = vsel %vm259, %v373, 0.0
      %375 = vadd.xlane.f32.xlu0 %v374
      %v376 = vpop.xlane.xlu0 %375
      %v377 = vrcp.pop %v376
      %v378 = vmul.f32 %v373, %v377
      %v379 = vpack.c.bf16 %v378, %v378
      %v381 = vsel %vm259, %v379, 0
      %383 = vmatprep.subr.bf16.mxu0 0
      %384 = vmatpush1.bf16.msra.mxu0 0
      %385 = vmatprep.subr.bf16.mxu0 0
      %386 = vmatpush1.bf16.msra.mxu0 0
      %387 = vmatprep.subr.bf16.mxu0 0
      %388 = vmatpush1.bf16.msra.mxu0 0
      %389 = vmatprep.subr.bf16.mxu0 0
      %390 = vmatpush1.bf16.msra.mxu0 0
      %391 = vmatprep.subr.bf16.mxu0 0
      %392 = vmatpush1.bf16.msra.mxu0 0
      %393 = vmatprep.subr.bf16.mxu0 0
      %394 = vmatpush1.bf16.msra.mxu0 0
      %395 = vmatprep.subr.bf16.mxu0 0
      %396 = vmatpush1.bf16.msra.mxu0 0
      %397 = vmatprep.subr.bf16.mxu0 0
      %398 = vmatpush1.bf16.msra.mxu0 %v277
      %399 = vmatprep.subr.bf16.mxu0 0
      %400 = vmatpush2.bf16.msra.mxu0 0
      %401 = vmatprep.subr.bf16.mxu0 0
      %402 = vmatpush2.bf16.msra.mxu0 0
      %403 = vmatprep.subr.bf16.mxu0 0
      %404 = vmatpush2.bf16.msra.mxu0 0
      %405 = vmatprep.subr.bf16.mxu0 0
      %406 = vmatpush2.bf16.msra.mxu0 0
      %407 = vmatprep.subr.bf16.mxu0 0
      %408 = vmatpush2.bf16.msra.mxu0 0
      %409 = vmatprep.subr.bf16.mxu0 0
      %410 = vmatpush2.bf16.msra.mxu0 0
      %411 = vmatprep.subr.bf16.mxu0 0
      %412 = vmatpush2.bf16.msra.mxu0 0
      %413 = vmatprep.subr.bf16.mxu0 0
      %414 = vmatpush2.bf16.msra.mxu0 0
      %415 = vmatprep.mubr.bf16.mxu0 0
      %416 = vmatmul.mubr.bf16.gmra.mxu0 %v381
      %v417 = vpop.f32.mrf.mxu0
      %v418 = vadd.f32 0.0, %v417
      %v419 = vpop.f32.mrf.mxu0
      %v420 = vpop.f32.mrf.mxu0
      %v421 = vpop.f32.mrf.mxu0
      %422 = vdwg.mxu0
      %423 = vrot.lane.b32.xlu0 %v321, 96
      %v424 = vpop.permute.xlu0 %423
      %v426 = vunpack.c.l.b16 %v203
      %v427 = vpack.c.b16 %v426, %v426
      %428 = vrot.lane.b32.xlu0 %v427, 112
      %v429 = vpop.permute.xlu0 %428
      %v431 = vsel %vm211, %v424, 0
      %v434 = vsel %vm211, %v429, 0
      %436 = vmatprep.subr.bf16.mxu0 0
      %437 = vmatpush1.bf16.xpose.msra.mxu0 0
      %438 = vmatprep.subr.bf16.mxu0 0
      %439 = vmatpush1.bf16.xpose.msra.mxu0 0
      %440 = vmatprep.subr.bf16.mxu0 0
      %441 = vmatpush1.bf16.xpose.msra.mxu0 0
      %442 = vmatprep.subr.bf16.mxu0 0
      %443 = vmatpush1.bf16.xpose.msra.mxu0 0
      %444 = vmatprep.subr.bf16.mxu0 0
      %445 = vmatpush1.bf16.xpose.msra.mxu0 0
      %446 = vmatprep.subr.bf16.mxu0 0
      %447 = vmatpush1.bf16.xpose.msra.mxu0 0
      %448 = vmatprep.subr.bf16.mxu0 0
      %449 = vmatpush1.bf16.xpose.msra.mxu0 0
      %450 = vmatprep.subr.bf16.mxu0 0
      %451 = vmatpush1.bf16.xpose.msra.mxu0 %v434
      %452 = vmatprep.subr.bf16.mxu0 0
      %453 = vmatpush2.bf16.xpose.msra.mxu0 0
      %454 = vmatprep.subr.bf16.mxu0 0
      %455 = vmatpush2.bf16.xpose.msra.mxu0 0
      %456 = vmatprep.subr.bf16.mxu0 0
      %457 = vmatpush2.bf16.xpose.msra.mxu0 0
      %458 = vmatprep.subr.bf16.mxu0 0
      %459 = vmatpush2.bf16.xpose.msra.mxu0 0
      %460 = vmatprep.subr.bf16.mxu0 0
      %461 = vmatpush2.bf16.xpose.msra.mxu0 0
      %462 = vmatprep.subr.bf16.mxu0 0
      %463 = vmatpush2.bf16.xpose.msra.mxu0 0
      %464 = vmatprep.subr.bf16.mxu0 0
      %465 = vmatpush2.bf16.xpose.msra.mxu0 0
      %466 = vmatprep.subr.bf16.mxu0 0
      %467 = vmatpush2.bf16.xpose.msra.mxu0 0
      %468 = vmatprep.mubr.bf16.mxu0 0
      %469 = vmatmul.mubr.bf16.gmra.mxu0 %v431
      %v470 = vpop.f32.mrf.mxu0
      %v471 = vadd.f32 0.0, %v470
      %v472 = vpop.f32.mrf.mxu0
      %v473 = vpop.f32.mrf.mxu0
      %v474 = vpop.f32.mrf.mxu0
      %475 = vdwg.mxu0
      %v476 = vsel %vm209, -inf, %v471
      %v477 = vsel %vm259, %v476, -inf
      %478 = vmax.xlane.f32.xlu0 %v477
      %v479 = vpop.xlane.xlu0 %478
      %v480 = vsub.f32 %v476, %v479
      %v481 = vmul.f32 %v480, 1.442695
      %v482 = vpow.pop %v481
      %v483 = vsel %vm259, %v482, 0.0
      %484 = vadd.xlane.f32.xlu0 %v483
      %v485 = vpop.xlane.xlu0 %484
      %v486 = vrcp.pop %v485
      %v487 = vmul.f32 %v482, %v486
      %v488 = vpack.c.bf16 %v487, %v487
      %v490 = vunpack.c.l.b16 %v204
      %v491 = vpack.c.b16 %v490, %v490
      %492 = vrot.lane.b32.xlu0 %v491, 112
      %v493 = vpop.permute.xlu0 %492
      %v495 = vsel %vm259, %v488, 0
      %v498 = vsel %vm275, %v493, 0
      %500 = vmatprep.subr.bf16.mxu0 0
      %501 = vmatpush1.bf16.msra.mxu0 0
      %502 = vmatprep.subr.bf16.mxu0 0
      %503 = vmatpush1.bf16.msra.mxu0 0
      %504 = vmatprep.subr.bf16.mxu0 0
      %505 = vmatpush1.bf16.msra.mxu0 0
      %506 = vmatprep.subr.bf16.mxu0 0
      %507 = vmatpush1.bf16.msra.mxu0 0
      %508 = vmatprep.subr.bf16.mxu0 0
      %509 = vmatpush1.bf16.msra.mxu0 0
      %510 = vmatprep.subr.bf16.mxu0 0
      %511 = vmatpush1.bf16.msra.mxu0 0
      %512 = vmatprep.subr.bf16.mxu0 0
      %513 = vmatpush1.bf16.msra.mxu0 0
      %514 = vmatprep.subr.bf16.mxu0 0
      %515 = vmatpush1.bf16.msra.mxu0 %v498
      %516 = vmatprep.subr.bf16.mxu0 0
      %517 = vmatpush2.bf16.msra.mxu0 0
      %518 = vmatprep.subr.bf16.mxu0 0
      %519 = vmatpush2.bf16.msra.mxu0 0
      %520 = vmatprep.subr.bf16.mxu0 0
      %521 = vmatpush2.bf16.msra.mxu0 0
      %522 = vmatprep.subr.bf16.mxu0 0
      %523 = vmatpush2.bf16.msra.mxu0 0
      %524 = vmatprep.subr.bf16.mxu0 0
      %525 = vmatpush2.bf16.msra.mxu0 0
      %526 = vmatprep.subr.bf16.mxu0 0
      %527 = vmatpush2.bf16.msra.mxu0 0
      %528 = vmatprep.subr.bf16.mxu0 0
      %529 = vmatpush2.bf16.msra.mxu0 0
      %530 = vmatprep.subr.bf16.mxu0 0
      %531 = vmatpush2.bf16.msra.mxu0 0
      %532 = vmatprep.mubr.bf16.mxu0 0
      %533 = vmatmul.mubr.bf16.gmra.mxu0 %v495
      %v534 = vpop.f32.mrf.mxu0
      %v535 = vadd.f32 0.0, %v534
      %v536 = vpop.f32.mrf.mxu0
      %v537 = vpop.f32.mrf.mxu0
      %v538 = vpop.f32.mrf.mxu0
      %539 = vdwg.mxu0
      %540 = vrot.lane.b32.xlu0 %v321, 80
      %v541 = vpop.permute.xlu0 %540
      %v543 = vsel %vm211, %v541, 0
      %545 = vmatprep.subr.bf16.mxu0 0
      %546 = vmatpush1.bf16.xpose.msra.mxu0 0
      %547 = vmatprep.subr.bf16.mxu0 0
      %548 = vmatpush1.bf16.xpose.msra.mxu0 0
      %549 = vmatprep.subr.bf16.mxu0 0
      %550 = vmatpush1.bf16.xpose.msra.mxu0 0
      %551 = vmatprep.subr.bf16.mxu0 0
      %552 = vmatpush1.bf16.xpose.msra.mxu0 0
      %553 = vmatprep.subr.bf16.mxu0 0
      %554 = vmatpush1.bf16.xpose.msra.mxu0 0
      %555 = vmatprep.subr.bf16.mxu0 0
      %556 = vmatpush1.bf16.xpose.msra.mxu0 0
      %557 = vmatprep.subr.bf16.mxu0 0
      %558 = vmatpush1.bf16.xpose.msra.mxu0 0
      %559 = vmatprep.subr.bf16.mxu0 0
      %560 = vmatpush1.bf16.xpose.msra.mxu0 %v434
      %561 = vmatprep.subr.bf16.mxu0 0
      %562 = vmatpush2.bf16.xpose.msra.mxu0 0
      %563 = vmatprep.subr.bf16.mxu0 0
      %564 = vmatpush2.bf16.xpose.msra.mxu0 0
      %565 = vmatprep.subr.bf16.mxu0 0
      %566 = vmatpush2.bf16.xpose.msra.mxu0 0
      %567 = vmatprep.subr.bf16.mxu0 0
      %568 = vmatpush2.bf16.xpose.msra.mxu0 0
      %569 = vmatprep.subr.bf16.mxu0 0
      %570 = vmatpush2.bf16.xpose.msra.mxu0 0
      %571 = vmatprep.subr.bf16.mxu0 0
      %572 = vmatpush2.bf16.xpose.msra.mxu0 0
      %573 = vmatprep.subr.bf16.mxu0 0
      %574 = vmatpush2.bf16.xpose.msra.mxu0 0
      %575 = vmatprep.subr.bf16.mxu0 0
      %576 = vmatpush2.bf16.xpose.msra.mxu0 0
      %577 = vmatprep.mubr.bf16.mxu0 0
      %578 = vmatmul.mubr.bf16.gmra.mxu0 %v543
      %v579 = vpop.f32.mrf.mxu0
      %v580 = vadd.f32 0.0, %v579
      %v581 = vpop.f32.mrf.mxu0
      %v582 = vpop.f32.mrf.mxu0
      %v583 = vpop.f32.mrf.mxu0
      %584 = vdwg.mxu0
      %v585 = vsel %vm209, -inf, %v580
      %v586 = vsel %vm259, %v585, -inf
      %587 = vmax.xlane.f32.xlu0 %v586
      %v588 = vpop.xlane.xlu0 %587
      %v589 = vsub.f32 %v585, %v588
      %v590 = vmul.f32 %v589, 1.442695
      %v591 = vpow.pop %v590
      %v592 = vsel %vm259, %v591, 0.0
      %593 = vadd.xlane.f32.xlu0 %v592
      %v594 = vpop.xlane.xlu0 %593
      %v595 = vrcp.pop %v594
      %v596 = vmul.f32 %v591, %v595
      %v597 = vpack.c.bf16 %v596, %v596
      %v599 = vsel %vm259, %v597, 0
      %601 = vmatprep.subr.bf16.mxu0 0
      %602 = vmatpush1.bf16.msra.mxu0 0
      %603 = vmatprep.subr.bf16.mxu0 0
      %604 = vmatpush1.bf16.msra.mxu0 0
      %605 = vmatprep.subr.bf16.mxu0 0
      %606 = vmatpush1.bf16.msra.mxu0 0
      %607 = vmatprep.subr.bf16.mxu0 0
      %608 = vmatpush1.bf16.msra.mxu0 0
      %609 = vmatprep.subr.bf16.mxu0 0
      %610 = vmatpush1.bf16.msra.mxu0 0
      %611 = vmatprep.subr.bf16.mxu0 0
      %612 = vmatpush1.bf16.msra.mxu0 0
      %613 = vmatprep.subr.bf16.mxu0 0
      %614 = vmatpush1.bf16.msra.mxu0 0
      %615 = vmatprep.subr.bf16.mxu0 0
      %616 = vmatpush1.bf16.msra.mxu0 %v498
      %617 = vmatprep.subr.bf16.mxu0 0
      %618 = vmatpush2.bf16.msra.mxu0 0
      %619 = vmatprep.subr.bf16.mxu0 0
      %620 = vmatpush2.bf16.msra.mxu0 0
      %621 = vmatprep.subr.bf16.mxu0 0
      %622 = vmatpush2.bf16.msra.mxu0 0
      %623 = vmatprep.subr.bf16.mxu0 0
      %624 = vmatpush2.bf16.msra.mxu0 0
      %625 = vmatprep.subr.bf16.mxu0 0
      %626 = vmatpush2.bf16.msra.mxu0 0
      %627 = vmatprep.subr.bf16.mxu0 0
      %628 = vmatpush2.bf16.msra.mxu0 0
      %629 = vmatprep.subr.bf16.mxu0 0
      %630 = vmatpush2.bf16.msra.mxu0 0
      %631 = vmatprep.subr.bf16.mxu0 0
      %632 = vmatpush2.bf16.msra.mxu0 0
      %633 = vmatprep.mubr.bf16.mxu0 0
      %634 = vmatmul.mubr.bf16.gmra.mxu0 %v599
      %v635 = vpop.f32.mrf.mxu0
      %v636 = vadd.f32 0.0, %v635
      %v637 = vpop.f32.mrf.mxu0
      %v638 = vpop.f32.mrf.mxu0
      %v639 = vpop.f32.mrf.mxu0
      %640 = vdwg.mxu0
      %642 = vrot.lane.b32.xlu0 %v418, 16
      %v643 = vpop.permute.xlu0 %642
      %646 = vrot.lane.b32.xlu0 %v535, 32
      %v647 = vpop.permute.xlu0 %646
      %650 = vrot.lane.b32.xlu0 %v636, 48
      %v651 = vpop.permute.xlu0 %650
      %v653 = vsel %vm211, %v314, %v643
      %vm654 = vcmask 261120
      %v655 = vsel %vm654, %v653, %v647
      %vm656 = vcmask 392192
      %v657 = vsel %vm656, %v655, %v651
      %v658 = vpack.c.bf16 %v657, %v657
      %vm659 = vcmask 519168
      %660 = vst.msk [vmem:[%s199] sm:$0xf] %vm659, %v658
      %p661 = scmp.lt.s32.totalorder %s14, 1
      %s662 = scalar_select %p661, %s14, 1
      %s663 = smul.addr %s662, 4
      %s664 = scalar_lea.vmem %s3, %s663
      // Predicated region
      $region33: #{fwd.10} parent=31 // pred_check
        %p665 = pneg %p110
      $region34: #{fwd.10} parent=31 // pred_check_branch
        %667 = sbr.rel (%p665) target = $region36
      $region35: #{fwd.10} parent=31 // pred_region
        _
      $region36: #{fwd.10} parent=31 // pred_fallthru
        _
    $region32: #{fwd.10} parent=5 // pred_fallthru
      _
    %p668 = scmp.le.s32.totalorder 2, %s9
    // Predicated region
    $region37: #{fwd.10} parent=5 // pred_check
      %p669 = pneg %p668
    $region38: #{fwd.10} parent=5 // pred_check_branch
      %671 = sbr.rel (%p669) target = $region40
    $region39: #{fwd.10} parent=5 // pred_region
      %s672 = ssub.s32 %s9, 2
      // Predicated region
      $region41: #{fwd.10} parent=39 // pred_check
        %p673 = pneg %p116
      $region42: #{fwd.10} parent=39 // pred_check_branch
        %675 = sbr.rel (%p673) target = $region44
      $region43: #{fwd.10} parent=39 // pred_region
        %p676 = scmp.lt.s32.totalorder %s15, 1
        %s677 = scalar_select %p676, %s15, 1
        %s678 = smul.addr %s677, 4
        %s679 = scalar_lea.vmem %s3, %s678
      $region44: #{fwd.10} parent=39 // pred_fallthru
        _
    $region40: #{fwd.10} parent=5 // pred_fallthru
      _
  $region6: #{fwd.10} parent=0 // loop_footer
    %s13 = sadd.s32 1, %s9
  $region7: #{fwd.10} parent=0 // loop_footer_branch
    %8 = sbr.rel target = $region3
  $region8: #{fwd.10} parent=0 // loop_exit
    _

// kernel: fwd.17
$region0: #{fwd.17}
  #allocation0 [shape = 'u32[]', space=smem, size = 0x4, offset = 0x4, fixed_abs, tag = 'smem constant byte address 0x4 - core index']
  #allocation1 [shape = 'u32[144,128]{1,0:T(1,128)}', space=vmem, size = 0x12000, scoped, tag = 'internal scratch']
  %s0 = inlined_call_operand.vmem [shape: bf16[16,64], index: 0, kind: input, shape index: {}]
  %s1 = inlined_call_operand.vmem [shape: f32[1,64], index: 1, kind: input, shape index: {}]
  %s2 = inlined_call_operand.vmem [shape: bf16[64,256], index: 2, kind: input, shape index: {}]
  %s3 = inlined_call_operand.hbm [shape: bf16[16,256], index: 3, kind: output, shape index: {}]
  %s4 = sld [smem:[#allocation0]]
  $region22: #{fwd.17} parent=0
    _
  %s6 = ssub.s32 1, %s4
  %s7 = scalar_select 0, %s6, %s4
  $region1: #{fwd.17} parent=0
    #allocation2 [shape = 'u8[8192]{0}', space=vmem, size = 0x2000, scoped, tag = 'output window, operand 0, single buffered']
    #allocation3 [shape = 's32[1]{0}', space=sflag, size = 0x4, scoped, tag = 'scoped memory for fwd.17']
    %8 = vsyncpa [#allocation3], 0
    // Predicated region
    $region2: #{fwd.17} parent=1 // pred_check
      _
    $region3: #{fwd.17} parent=1 // pred_check_branch
      %10 = sbr.rel (0) target = $region5
    $region4: #{fwd.17} parent=1 // pred_region
      _
    $region5: #{fwd.17} parent=1 // pred_fallthru
      _
    // Predicated region
    $region6: #{fwd.17} parent=1 // pred_check
      _
    $region7: #{fwd.17} parent=1 // pred_check_branch
      %12 = sbr.rel (0) target = $region9
    $region8: #{fwd.17} parent=1 // pred_region
      _
    $region9: #{fwd.17} parent=1 // pred_fallthru
      _
    // Predicated region
    $region10: #{fwd.17} parent=1 // pred_check
      _
    $region11: #{fwd.17} parent=1 // pred_check_branch
      %14 = sbr.rel (0) target = $region13
    $region12: #{fwd.17} parent=1 // pred_region
      _
    $region13: #{fwd.17} parent=1 // pred_fallthru
      _
    %v16 = vld [vmem:[%s0] sm:$0xf]
    %v17 = vld [vmem:[%s0 + $0x4] sm:$0xf]
    %v18 = vunpack.c.l.bf16 %v16
    %v19 = vunpack.c.l.bf16 %v17
    %v20 = vld [vmem:[%s1] sm:$0x1]
    %v21 = vmul.f32 %v18, %v18
    %v22 = vmul.f32 %v19, %v19
    %vm23 = vcmask 523264
    %v24 = vsel %vm23, %v21, 0.0
    %25 = vadd.xlane.f32.xlu0 %v24
    %v26 = vpop.xlane.xlu0 %25
    %v27 = vsel %vm23, %v22, 0.0
    %28 = vadd.xlane.f32.xlu0 %v27
    %v29 = vpop.xlane.xlu0 %28
    %v30 = vrcp.pop 64.0
    %v31 = vmul.f32 %v26, %v30
    %v32 = vmul.f32 %v29, %v30
    %v33 = vadd.f32 %v31, 1e-05
    %v34 = vadd.f32 %v32, 1e-05
    %v35 = vrsqrt.pop %v33
    %v36 = vrsqrt.pop %v34
    %v37 = vmul.f32 %v18, %v35
    %v38 = vmul.f32 %v19, %v36
    %v40 = vlaneseq
    %v41 = vshrl.u32 %v40, 7
    %v42 = vsub.s32 0, %v41
    %v43 = vrot.slane %v20, %v42
    %v45 = vmul.f32 %v37, %v43
    %v46 = vmul.f32 %v38, %v43
    %v47 = vpack.c.bf16 %v46, %v45
    %v48 = vld [vmem:[%s2] sm:$0xff]
    %v49 = vld [vmem:[%s2 + $0x8] sm:$0xff]
    %v50 = vld [vmem:[%s2 + $0x10] sm:$0xff]
    %v51 = vld [vmem:[%s2 + $0x18] sm:$0xff]
    %v52 = vld [vmem:[%s2 + $0x20] sm:$0xff]
    %v53 = vld [vmem:[%s2 + $0x28] sm:$0xff]
    %v54 = vld [vmem:[%s2 + $0x30] sm:$0xff]
    %v55 = vld [vmem:[%s2 + $0x38] sm:$0xff]
    %v64 = vunpack.c.l.b16 %v48
    %v65 = vunpack.c.h.b16 %v48
    %v66 = vunpack.c.l.b16 %v49
    %v67 = vunpack.c.h.b16 %v49
    %v68 = vunpack.c.l.b16 %v50
    %v69 = vunpack.c.h.b16 %v50
    %v70 = vunpack.c.l.b16 %v51
    %v71 = vunpack.c.h.b16 %v51
    %v72 = vunpack.c.l.b16 %v52
    %v73 = vunpack.c.h.b16 %v52
    %v74 = vunpack.c.l.b16 %v53
    %v75 = vunpack.c.h.b16 %v53
    %v76 = vunpack.c.l.b16 %v54
    %v77 = vunpack.c.h.b16 %v54
    %v78 = vunpack.c.l.b16 %v55
    %v79 = vunpack.c.h.b16 %v55
    %v80 = vpack.c.b16 %v66, %v64
    %v81 = vpack.c.b16 %v67, %v65
    %v82 = vpack.c.b16 %v70, %v68
    %v83 = vpack.c.b16 %v71, %v69
    %v84 = vpack.c.b16 %v74, %v72
    %v85 = vpack.c.b16 %v75, %v73
    %v86 = vpack.c.b16 %v78, %v76
    %v87 = vpack.c.b16 %v79, %v77
    %v97 = vsel %vm23, %v47, 0
    %99 = vmatprep.subr.bf16.mxu0 0
    %100 = vmatpush1.bf16.msra.mxu0 0
    %101 = vmatprep.subr.bf16.mxu0 0
    %102 = vmatpush1.bf16.msra.mxu0 0
    %103 = vmatprep.subr.bf16.mxu0 0
    %104 = vmatpush1.bf16.msra.mxu0 0
    %105 = vmatprep.subr.bf16.mxu0 0
    %106 = vmatpush1.bf16.msra.mxu0 0
    %107 = vmatprep.subr.bf16.mxu0 %v87
    %108 = vmatpush1.bf16.msra.mxu0 %v86
    %109 = vmatprep.subr.bf16.mxu0 %v85
    %110 = vmatpush1.bf16.msra.mxu0 %v84
    %111 = vmatprep.subr.bf16.mxu0 %v83
    %112 = vmatpush1.bf16.msra.mxu0 %v82
    %113 = vmatprep.subr.bf16.mxu0 %v81
    %114 = vmatpush1.bf16.msra.mxu0 %v80
    %115 = vmatprep.subr.bf16.mxu0 0
    %116 = vmatpush2.bf16.msra.mxu0 0
    %117 = vmatprep.subr.bf16.mxu0 0
    %118 = vmatpush2.bf16.msra.mxu0 0
    %119 = vmatprep.subr.bf16.mxu0 0
    %120 = vmatpush2.bf16.msra.mxu0 0
    %121 = vmatprep.subr.bf16.mxu0 0
    %122 = vmatpush2.bf16.msra.mxu0 0
    %123 = vmatprep.subr.bf16.mxu0 0
    %124 = vmatpush2.bf16.msra.mxu0 0
    %125 = vmatprep.subr.bf16.mxu0 0
    %126 = vmatpush2.bf16.msra.mxu0 0
    %127 = vmatprep.subr.bf16.mxu0 0
    %128 = vmatpush2.bf16.msra.mxu0 0
    %129 = vmatprep.subr.bf16.mxu0 0
    %130 = vmatpush2.bf16.msra.mxu0 0
    %131 = vmatprep.mubr.bf16.mxu0 0
    %132 = vmatmul.mubr.bf16.gmra.mxu0 %v97
    %v133 = vpop.f32.mrf.mxu0
    %v134 = vadd.f32 0.0, %v133
    %v135 = vpop.f32.mrf.mxu0
    %v136 = vadd.f32 0.0, %v135
    %v137 = vpop.f32.mrf.mxu0
    %v138 = vadd.f32 0.0, %v137
    %v139 = vpop.f32.mrf.mxu0
    %v140 = vadd.f32 0.0, %v139
    %141 = vdwg.mxu0
    %v142 = vpack.c.bf16 %v138, %v134
    %v143 = vpack.c.bf16 %v140, %v136
    %v146 = vunpack.c.l.b16 %v142
    %v147 = vunpack.c.l.b16 %v143
    %v148 = vunpack.c.h.b16 %v142
    %v149 = vunpack.c.h.b16 %v143
    %v150 = vpack.c.b16 %v147, %v146
    %v151 = vpack.c.b16 %v149, %v148
    %154 = vst [vmem:[#allocation2] sm:$0xff] %v150
    %155 = vst [vmem:[#allocation2 + $0x8] sm:$0xff] %v151
    // Predicated region
    $region14: #{fwd.17} parent=1 // pred_check
      _
    $region15: #{fwd.17} parent=1 // pred_check_branch
      %157 = sbr.rel (0) target = $region17
    $region16: #{fwd.17} parent=1 // pred_region
      %s159 = ssub.s32 256, 256
      %160 = vsyncadd [#allocation3], %s159
      %s161 = sshll.u32 [#allocation2], 4
      %s162 = int_to_ptr.vmem [resolvable:$true] %s161
      %167 = dma.vmem_to_hbm [thread:$0]  %s162, 256, %s3, [#allocation3], 128, 128, 8
    $region17: #{fwd.17} parent=1 // pred_fallthru
      _
    // Predicated region
    $region18: #{fwd.17} parent=1 // pred_check
      _
    $region19: #{fwd.17} parent=1 // pred_check_branch
      %169 = sbr.rel (0) target = $region21
    $region20: #{fwd.17} parent=1 // pred_region
      %170 = dma.done [#allocation3], 256
    $region21: #{fwd.17} parent=1 // pred_fallthru
      _
    %171 = vsyncpa [#allocation3], 1

// kernel: fwd.12
$region0: #{fwd.12}
  #allocation0 [shape = 'u32[]', space=smem, size = 0x4, offset = 0x4, fixed_abs, tag = 'smem constant byte address 0x4 - core index']
  #allocation1 [shape = 'u32[144,128]{1,0:T(1,128)}', space=vmem, size = 0x12000, scoped, tag = 'internal scratch']
  #allocation2 [shape = 'f32[16,64]{1,0:T(8,128)}', space=vmem, size = 0x2000, scoped, tag = 'scratch operand']
  %s0 = inlined_call_operand.vmem [shape: bf16[16,64], index: 0, kind: input, shape index: {}]
  %s1 = inlined_call_operand.vmem [shape: f32[1,64], index: 1, kind: input, shape index: {}]
  %s2 = inlined_call_operand.vmem [shape: bf16[64,128], index: 2, kind: input, shape index: {}]
  %s3 = inlined_call_operand.vmem [shape: bf16[64,128], index: 3, kind: input, shape index: {}]
  %s4 = inlined_call_operand.vmem [shape: bf16[128,64], index: 4, kind: input, shape index: {}]
  %s5 = inlined_call_operand.vmem [shape: bf16[16,64], index: 5, kind: output, shape index: {}]
  %s6 = sld [smem:[#allocation0]]
  $region38: #{fwd.12} parent=0
    _
  %s8 = ssub.s32 1, %s6
  %s9 = scalar_select 0, %s8, %s6
  // Predicated region
  $region2: #{fwd.12} parent=0 // pred_check
    _
  $region3: #{fwd.12} parent=0 // pred_check_branch
    %11 = sbr.rel (0) target = $region5
  $region4: #{fwd.12} parent=0 // pred_region
    _
  $region5: #{fwd.12} parent=0 // pred_fallthru
    _
  // Predicated region
  $region6: #{fwd.12} parent=0 // pred_check
    _
  $region7: #{fwd.12} parent=0 // pred_check_branch
    %13 = sbr.rel (0) target = $region9
  $region8: #{fwd.12} parent=0 // pred_region
    _
  $region9: #{fwd.12} parent=0 // pred_fallthru
    _
  // Predicated region
  $region10: #{fwd.12} parent=0 // pred_check
    _
  $region11: #{fwd.12} parent=0 // pred_check_branch
    %15 = sbr.rel (0) target = $region13
  $region12: #{fwd.12} parent=0 // pred_region
    _
  $region13: #{fwd.12} parent=0 // pred_fallthru
    _
  // Predicated region
  $region14: #{fwd.12} parent=0 // pred_check
    _
  $region15: #{fwd.12} parent=0 // pred_check_branch
    %17 = sbr.rel (0) target = $region17
  $region16: #{fwd.12} parent=0 // pred_region
    _
  $region17: #{fwd.12} parent=0 // pred_fallthru
    _
  // Predicated region
  $region18: #{fwd.12} parent=0 // pred_check
    _
  $region19: #{fwd.12} parent=0 // pred_check_branch
    %19 = sbr.rel (0) target = $region21
  $region20: #{fwd.12} parent=0 // pred_region
    _
  $region21: #{fwd.12} parent=0 // pred_fallthru
    _
  %v21 = vld [vmem:[%s0] sm:$0xf]
  %v22 = vld [vmem:[%s0 + $0x4] sm:$0xf]
  %v23 = vunpack.c.l.bf16 %v21
  %v24 = vunpack.c.l.bf16 %v22
  %v25 = vld [vmem:[%s1] sm:$0x1]
  %v26 = vmul.f32 %v23, %v23
  %v27 = vmul.f32 %v24, %v24
  %vm28 = vcmask 523264
  %v29 = vsel %vm28, %v26, 0.0
  %30 = vadd.xlane.f32.xlu0 %v29
  %v31 = vpop.xlane.xlu0 %30
  %v32 = vsel %vm28, %v27, 0.0
  %33 = vadd.xlane.f32.xlu0 %v32
  %v34 = vpop.xlane.xlu0 %33
  %v35 = vrcp.pop 64.0
  %v36 = vmul.f32 %v31, %v35
  %v37 = vmul.f32 %v34, %v35
  %v38 = vadd.f32 %v36, 1e-05
  %v39 = vadd.f32 %v37, 1e-05
  %v40 = vrsqrt.pop %v38
  %v41 = vrsqrt.pop %v39
  %v42 = vmul.f32 %v23, %v40
  %v43 = vmul.f32 %v24, %v41
  %v45 = vlaneseq
  %v46 = vshrl.u32 %v45, 7
  %v47 = vsub.s32 0, %v46
  %v48 = vrot.slane %v25, %v47
  %v50 = vmul.f32 %v42, %v48
  %v51 = vmul.f32 %v43, %v48
  %v52 = vpack.c.bf16 %v51, %v50
  %v53 = vld [vmem:[%s2] sm:$0xf]
  %v54 = vld [vmem:[%s2 + $0x4] sm:$0xf]
  %v55 = vld [vmem:[%s2 + $0x8] sm:$0xf]
  %v56 = vld [vmem:[%s2 + $0xc] sm:$0xf]
  %v57 = vld [vmem:[%s2 + $0x10] sm:$0xf]
  %v58 = vld [vmem:[%s2 + $0x14] sm:$0xf]
  %v59 = vld [vmem:[%s2 + $0x18] sm:$0xf]
  %v60 = vld [vmem:[%s2 + $0x1c] sm:$0xf]
  %v69 = vunpack.c.l.b16 %v53
  %v70 = vunpack.c.l.b16 %v54
  %v71 = vunpack.c.l.b16 %v55
  %v72 = vunpack.c.l.b16 %v56
  %v73 = vunpack.c.l.b16 %v57
  %v74 = vunpack.c.l.b16 %v58
  %v75 = vunpack.c.l.b16 %v59
  %v76 = vunpack.c.l.b16 %v60
  %v77 = vpack.c.b16 %v70, %v69
  %v78 = vpack.c.b16 %v72, %v71
  %v79 = vpack.c.b16 %v74, %v73
  %v80 = vpack.c.b16 %v76, %v75
  %v86 = vsel %vm28, %v52, 0
  %88 = vmatprep.subr.bf16.mxu0 0
  %89 = vmatpush1.bf16.msra.mxu0 0
  %90 = vmatprep.subr.bf16.mxu0 0
  %91 = vmatpush1.bf16.msra.mxu0 0
  %92 = vmatprep.subr.bf16.mxu0 0
  %93 = vmatpush1.bf16.msra.mxu0 0
  %94 = vmatprep.subr.bf16.mxu0 0
  %95 = vmatpush1.bf16.msra.mxu0 0
  %96 = vmatprep.subr.bf16.mxu0 0
  %97 = vmatpush1.bf16.msra.mxu0 %v80
  %98 = vmatprep.subr.bf16.mxu0 0
  %99 = vmatpush1.bf16.msra.mxu0 %v79
  %100 = vmatprep.subr.bf16.mxu0 0
  %101 = vmatpush1.bf16.msra.mxu0 %v78
  %102 = vmatprep.subr.bf16.mxu0 0
  %103 = vmatpush1.bf16.msra.mxu0 %v77
  %104 = vmatprep.subr.bf16.mxu0 0
  %105 = vmatpush2.bf16.msra.mxu0 0
  %106 = vmatprep.subr.bf16.mxu0 0
  %107 = vmatpush2.bf16.msra.mxu0 0
  %108 = vmatprep.subr.bf16.mxu0 0
  %109 = vmatpush2.bf16.msra.mxu0 0
  %110 = vmatprep.subr.bf16.mxu0 0
  %111 = vmatpush2.bf16.msra.mxu0 0
  %112 = vmatprep.subr.bf16.mxu0 0
  %113 = vmatpush2.bf16.msra.mxu0 0
  %114 = vmatprep.subr.bf16.mxu0 0
  %115 = vmatpush2.bf16.msra.mxu0 0
  %116 = vmatprep.subr.bf16.mxu0 0
  %117 = vmatpush2.bf16.msra.mxu0 0
  %118 = vmatprep.subr.bf16.mxu0 0
  %119 = vmatpush2.bf16.msra.mxu0 0
  %120 = vmatprep.mubr.bf16.mxu0 0
  %121 = vmatmul.mubr.bf16.gmra.mxu0 %v86
  %v122 = vpop.f32.mrf.mxu0
  %v123 = vadd.f32 0.0, %v122
  %v124 = vpop.f32.mrf.mxu0
  %v125 = vpop.f32.mrf.mxu0
  %v126 = vadd.f32 0.0, %v125
  %v127 = vpop.f32.mrf.mxu0
  %128 = vdwg.mxu0
  %v129 = vld [vmem:[%s3] sm:$0xf]
  %v130 = vld [vmem:[%s3 + $0x4] sm:$0xf]
  %v131 = vld [vmem:[%s3 + $0x8] sm:$0xf]
  %v132 = vld [vmem:[%s3 + $0xc] sm:$0xf]
  %v133 = vld [vmem:[%s3 + $0x10] sm:$0xf]
  %v134 = vld [vmem:[%s3 + $0x14] sm:$0xf]
  %v135 = vld [vmem:[%s3 + $0x18] sm:$0xf]
  %v136 = vld [vmem:[%s3 + $0x1c] sm:$0xf]
  %v145 = vunpack.c.l.b16 %v129
  %v146 = vunpack.c.l.b16 %v130
  %v147 = vunpack.c.l.b16 %v131
  %v148 = vunpack.c.l.b16 %v132
  %v149 = vunpack.c.l.b16 %v133
  %v150 = vunpack.c.l.b16 %v134
  %v151 = vunpack.c.l.b16 %v135
  %v152 = vunpack.c.l.b16 %v136
  %v153 = vpack.c.b16 %v146, %v145
  %v154 = vpack.c.b16 %v148, %v147
  %v155 = vpack.c.b16 %v150, %v149
  %v156 = vpack.c.b16 %v152, %v151
  %161 = vmatprep.subr.bf16.mxu0 0
  %162 = vmatpush1.bf16.msra.mxu0 0
  %163 = vmatprep.subr.bf16.mxu0 0
  %164 = vmatpush1.bf16.msra.mxu0 0
  %165 = vmatprep.subr.bf16.mxu0 0
  %166 = vmatpush1.bf16.msra.mxu0 0
  %167 = vmatprep.subr.bf16.mxu0 0
  %168 = vmatpush1.bf16.msra.mxu0 0
  %169 = vmatprep.subr.bf16.mxu0 0
  %170 = vmatpush1.bf16.msra.mxu0 %v156
  %171 = vmatprep.subr.bf16.mxu0 0
  %172 = vmatpush1.bf16.msra.mxu0 %v155
  %173 = vmatprep.subr.bf16.mxu0 0
  %174 = vmatpush1.bf16.msra.mxu0 %v154
  %175 = vmatprep.subr.bf16.mxu0 0
  %176 = vmatpush1.bf16.msra.mxu0 %v153
  %177 = vmatprep.subr.bf16.mxu0 0
  %178 = vmatpush2.bf16.msra.mxu0 0
  %179 = vmatprep.subr.bf16.mxu0 0
  %180 = vmatpush2.bf16.msra.mxu0 0
  %181 = vmatprep.subr.bf16.mxu0 0
  %182 = vmatpush2.bf16.msra.mxu0 0
  %183 = vmatprep.subr.bf16.mxu0 0
  %184 = vmatpush2.bf16.msra.mxu0 0
  %185 = vmatprep.subr.bf16.mxu0 0
  %186 = vmatpush2.bf16.msra.mxu0 0
  %187 = vmatprep.subr.bf16.mxu0 0
  %188 = vmatpush2.bf16.msra.mxu0 0
  %189 = vmatprep.subr.bf16.mxu0 0
  %190 = vmatpush2.bf16.msra.mxu0 0
  %191 = vmatprep.subr.bf16.mxu0 0
  %192 = vmatpush2.bf16.msra.mxu0 0
  %193 = vmatprep.mubr.bf16.mxu0 0
  %194 = vmatmul.mubr.bf16.gmra.mxu0 %v86
  %v195 = vpop.f32.mrf.mxu0
  %v196 = vadd.f32 0.0, %v195
  %v197 = vpop.f32.mrf.mxu0
  %v198 = vpop.f32.mrf.mxu0
  %v199 = vadd.f32 0.0, %v198
  %v200 = vpop.f32.mrf.mxu0
  %201 = vdwg.mxu0
  %v202 = vxor.u32 %v123, 2147483648
  %v203 = vxor.u32 %v126, 2147483648
  %v204 = vmul.f32 %v202, 1.442695
  %v205 = vpow.pop %v204
  %v206 = vmul.f32 %v203, 1.442695
  %v207 = vpow.pop %v206
  %v208 = vadd.f32 %v205, 1.0
  %v209 = vadd.f32 %v207, 1.0
  %v210 = vrcp.pop %v208
  %v211 = vmul.f32 1.0, %v210
  %v212 = vrcp.pop %v209
  %v213 = vmul.f32 1.0, %v212
  %v214 = vmul.f32 %v123, %v211
  %v215 = vmul.f32 %v126, %v213
  %v216 = vmul.f32 %v214, %v196
  %v217 = vmul.f32 %v215, %v199
  %v218 = vpack.c.bf16 %v217, %v216
  %p219 = scmp.eq.s32.totalorder 0, 0
  // Predicated region
  $region22: #{fwd.12} parent=0 // pred_check
    %p220 = pneg %p219
  $region23: #{fwd.12} parent=0 // pred_check_branch
    %222 = sbr.rel (%p220) target = $region25
  $region24: #{fwd.12} parent=0 // pred_region
    %223 = vst.msk [vmem:[#allocation2] sm:$0xff] %vm28, 0.0
    %224 = vst.msk [vmem:[#allocation2 + $0x8] sm:$0xff] %vm28, 0.0
  $region25: #{fwd.12} parent=0 // pred_fallthru
    _
  %v225 = vld [vmem:[#allocation2] sm:$0xff]
  %v226 = vld [vmem:[#allocation2 + $0x8] sm:$0xff]
  %v227 = vld [vmem:[%s4] sm:$0xf]
  %v228 = vld [vmem:[%s4 + $0x4] sm:$0xf]
  %v229 = vld [vmem:[%s4 + $0x8] sm:$0xf]
  %v230 = vld [vmem:[%s4 + $0xc] sm:$0xf]
  %v231 = vld [vmem:[%s4 + $0x10] sm:$0xf]
  %v232 = vld [vmem:[%s4 + $0x14] sm:$0xf]
  %v233 = vld [vmem:[%s4 + $0x18] sm:$0xf]
  %v234 = vld [vmem:[%s4 + $0x1c] sm:$0xf]
  %v235 = vld [vmem:[%s4 + $0x20] sm:$0xf]
  %v236 = vld [vmem:[%s4 + $0x24] sm:$0xf]
  %v237 = vld [vmem:[%s4 + $0x28] sm:$0xf]
  %v238 = vld [vmem:[%s4 + $0x2c] sm:$0xf]
  %v239 = vld [vmem:[%s4 + $0x30] sm:$0xf]
  %v240 = vld [vmem:[%s4 + $0x34] sm:$0xf]
  %v241 = vld [vmem:[%s4 + $0x38] sm:$0xf]
  %v242 = vld [vmem:[%s4 + $0x3c] sm:$0xf]
  %v259 = vunpack.c.l.b16 %v227
  %v260 = vunpack.c.l.b16 %v228
  %v261 = vunpack.c.l.b16 %v229
  %v262 = vunpack.c.l.b16 %v230
  %v263 = vunpack.c.l.b16 %v231
  %v264 = vunpack.c.l.b16 %v232
  %v265 = vunpack.c.l.b16 %v233
  %v266 = vunpack.c.l.b16 %v234
  %v267 = vunpack.c.l.b16 %v235
  %v268 = vunpack.c.l.b16 %v236
  %v269 = vunpack.c.l.b16 %v237
  %v270 = vunpack.c.l.b16 %v238
  %v271 = vunpack.c.l.b16 %v239
  %v272 = vunpack.c.l.b16 %v240
  %v273 = vunpack.c.l.b16 %v241
  %v274 = vunpack.c.l.b16 %v242
  %v275 = vpack.c.b16 %v260, %v259
  %v276 = vpack.c.b16 %v262, %v261
  %v277 = vpack.c.b16 %v264, %v263
  %v278 = vpack.c.b16 %v266, %v265
  %v279 = vpack.c.b16 %v268, %v267
  %v280 = vpack.c.b16 %v270, %v269
  %v281 = vpack.c.b16 %v272, %v271
  %v282 = vpack.c.b16 %v274, %v273
  %291 = vmatprep.subr.bf16.mxu0 0
  %292 = vmatpush1.bf16.msra.mxu0 %v282
  %293 = vmatprep.subr.bf16.mxu0 0
  %294 = vmatpush1.bf16.msra.mxu0 %v281
  %295 = vmatprep.subr.bf16.mxu0 0
  %296 = vmatpush1.bf16.msra.mxu0 %v280
  %297 = vmatprep.subr.bf16.mxu0 0
  %298 = vmatpush1.bf16.msra.mxu0 %v279
  %299 = vmatprep.subr.bf16.mxu0 0
  %300 = vmatpush1.bf16.msra.mxu0 %v278
  %301 = vmatprep.subr.bf16.mxu0 0
  %302 = vmatpush1.bf16.msra.mxu0 %v277
  %303 = vmatprep.subr.bf16.mxu0 0
  %304 = vmatpush1.bf16.msra.mxu0 %v276
  %305 = vmatprep.subr.bf16.mxu0 0
  %306 = vmatpush1.bf16.msra.mxu0 %v275
  %307 = vmatprep.subr.bf16.mxu0 0
  %308 = vmatpush2.bf16.msra.mxu0 0
  %309 = vmatprep.subr.bf16.mxu0 0
  %310 = vmatpush2.bf16.msra.mxu0 0
  %311 = vmatprep.subr.bf16.mxu0 0
  %312 = vmatpush2.bf16.msra.mxu0 0
  %313 = vmatprep.subr.bf16.mxu0 0
  %314 = vmatpush2.bf16.msra.mxu0 0
  %315 = vmatprep.subr.bf16.mxu0 0
  %316 = vmatpush2.bf16.msra.mxu0 0
  %317 = vmatprep.subr.bf16.mxu0 0
  %318 = vmatpush2.bf16.msra.mxu0 0
  %319 = vmatprep.subr.bf16.mxu0 0
  %320 = vmatpush2.bf16.msra.mxu0 0
  %321 = vmatprep.subr.bf16.mxu0 0
  %322 = vmatpush2.bf16.msra.mxu0 0
  %323 = vmatprep.mubr.bf16.mxu0 0
  %324 = vmatmul.mubr.bf16.gmra.mxu0 %v218
  %v325 = vpop.f32.mrf.mxu0
  %v326 = vadd.f32 0.0, %v325
  %v327 = vpop.f32.mrf.mxu0
  %v328 = vpop.f32.mrf.mxu0
  %v329 = vadd.f32 0.0, %v328
  %v330 = vpop.f32.mrf.mxu0
  %331 = vdwg.mxu0
  %v332 = vadd.f32 %v225, %v326
  %v333 = vadd.f32 %v226, %v329
  %334 = vst.msk [vmem:[#allocation2] sm:$0xff] %vm28, %v332
  %335 = vst.msk [vmem:[#allocation2 + $0x8] sm:$0xff] %vm28, %v333
  // Predicated region
  $region26: #{fwd.12} parent=0 // pred_check
    %p336 = pneg %p219
  $region27: #{fwd.12} parent=0 // pred_check_branch
    %338 = sbr.rel (%p336) target = $region29
  $region28: #{fwd.12} parent=0 // pred_region
    %v339 = vld [vmem:[#allocation2] sm:$0xff]
    %v340 = vld [vmem:[#allocation2 + $0x8] sm:$0xff]
    %v341 = vadd.f32 %v339, %v23
    %v342 = vadd.f32 %v340, %v24
    %v343 = vpack.c.bf16 %v342, %v341
    %v345 = vunpack.c.l.b16 %v343
    %v346 = vunpack.c.h.b16 %v343
    %v347 = vpack.c.b16 %v345, %v345
    %v348 = vpack.c.b16 %v346, %v346
    %vm351 = vcmask 519168
    %352 = vst.msk [vmem:[%s5] sm:$0xf] %vm351, %v347
    %353 = vst.msk [vmem:[%s5 + $0x4] sm:$0xf] %vm351, %v348
  $region29: #{fwd.12} parent=0 // pred_fallthru
    _
  // Predicated region
  $region30: #{fwd.12} parent=0 // pred_check
    _
  $region31: #{fwd.12} parent=0 // pred_check_branch
    %355 = sbr.rel (0) target = $region33
  $region32: #{fwd.12} parent=0 // pred_region
    _
  $region33: #{fwd.12} parent=0 // pred_fallthru
    _
  // Predicated region
  $region34: #{fwd.12} parent=0 // pred_check
    _
  $region35: #{fwd.12} parent=0 // pred_check_branch
    %357 = sbr.rel (0) target = $region37
  $region36: #{fwd.12} parent=0 // pred_region
    _
  $region37: #{fwd.12} parent=0 // pred_fallthru
    _

</llo_original>
